<compile_context>
chip_gen: v5e
topology: v5e:2x2
jax: 0.10.0
libtpu: 0.0.40
codegen_flags: <defaults>
</compile_context>

<pallas_src>
import functools
import math

import jax
import jax.numpy as jnp
from jax.experimental import pallas as pl
from jax.experimental.pallas import tpu as pltpu

LN_EPS = 1e-5          # torch.nn.LayerNorm default
NEG_INF = -1e30        # additive causal-mask fill (exp underflows to exactly 0 in fp32)
VMEM_LIMIT_BYTES = 64 * 1024 * 1024   # holds resident bf16 CLIP-L weights, fits v7x VMEM


def _layer_norm(x, g, b):
    mu = jnp.mean(x, axis=-1, keepdims=True)
    var = jnp.mean(jnp.square(x - mu), axis=-1, keepdims=True)
    return (x - mu) * jax.lax.rsqrt(var + LN_EPS) * g + b


# ---------------------------------------------------------------------------
# Fused pre-LN transformer residual block (Bt batch elements per grid step)
# ---------------------------------------------------------------------------
def _resblock_kernel(x_ref, pos_ref, ln1g_ref, ln1b_ref, wqkv_ref, bqkv_ref,
                     wout_ref, bout_ref, ln2g_ref, ln2b_ref,
                     wfc_ref, bfc_ref, wproj_ref, bproj_ref,
                     lnfg_ref, lnfb_ref,
                     o_ref, attn_ref,
                     *, num_heads, add_pos, final_ln):
    bt, S, D = x_ref.shape
    dh = D // num_heads
    M = bt * S
    bf16 = jnp.bfloat16

    x3 = x_ref[...]                             # (Bt, S, D) f32 residual stream
    if add_pos:                                 # fused positional-embedding add (first layer)
        x3 = x3 + pos_ref[...]
    x = x3.reshape(M, D)

    # Causal mask built in-kernel (no input DMA).
    row = jax.lax.broadcasted_iota(jnp.int32, (S, S), 0)
    col = jax.lax.broadcasted_iota(jnp.int32, (S, S), 1)
    mask = jnp.where(col > row, jnp.float32(NEG_INF), jnp.float32(0.0))

    # ---- multi-head self-attention (x = x + attn(ln1(x))), causal mask ----
    h = _layer_norm(x, ln1g_ref[...], ln1b_ref[...])
    # 1/sqrt(dh) is pre-folded into the Q columns of w_qkv (and b_qkv) at init.
    qkv = jnp.dot(h.astype(bf16), wqkv_ref[...],
                  preferred_element_type=jnp.float32) + bqkv_ref[...]   # (M, 3D) f32

    # Per-(batch, head) attention; head outputs land in a VMEM scratch tile so the
    # output projection is a single full-width matmul instead of H tiny ones.
    # TODO(synk): dh-wide (64 at CLIP-L) Q/K/V lane slices still straddle vreg lane
    # boundaries for odd heads; full alignment would need head-pair packing.
    for b in range(bt):
        r0 = b * S
        for hh in range(num_heads):
            c = hh * dh
            qh = qkv[r0:r0 + S, c:c + dh]
            kh = qkv[r0:r0 + S, D + c:D + c + dh]
            vh = qkv[r0:r0 + S, 2 * D + c:2 * D + c + dh]
            s = jax.lax.dot_general(qh.astype(bf16), kh.astype(bf16),
                                    (((1,), (1,)), ((), ())),
                                    preferred_element_type=jnp.float32)   # (S, S)
            s = s + mask
            s = s - jnp.max(s, axis=-1, keepdims=True)
            p = jnp.exp(s)
            p = p * pl.reciprocal(jnp.sum(p, axis=-1, keepdims=True), approx=True)
            oh = jnp.dot(p.astype(bf16), vh.astype(bf16),
                         preferred_element_type=jnp.float32)              # (S, dh)
            attn_ref[r0:r0 + S, c:c + dh] = oh.astype(bf16)

    proj = jnp.dot(attn_ref[...], wout_ref[...],
                   preferred_element_type=jnp.float32) + bout_ref[...]    # (M, D)
    x = x + proj

    # ---- MLP (x = x + mlp(ln2(x))) ----
    h2 = _layer_norm(x, ln2g_ref[...], ln2b_ref[...])
    hid = jnp.dot(h2.astype(bf16), wfc_ref[...],
                  preferred_element_type=jnp.float32) + bfc_ref[...]
    # TODO(synk): OpenCLIP laion2b uses exact erf-GELU; tanh-approx GELU used here.
    hid = jax.nn.gelu(hid, approximate=True)
    mlp = jnp.dot(hid.astype(bf16), wproj_ref[...],
                  preferred_element_type=jnp.float32) + bproj_ref[...]
    x = x + mlp

    if final_ln:                                # fused ln_final (last layer only)
        x = _layer_norm(x, lnfg_ref[...], lnfb_ref[...])

    o_ref[...] = x.reshape(bt, S, D)


def _fs(shape):
    """BlockSpec covering the full array; constant index map -> stays resident."""
    n = len(shape)
    return pl.BlockSpec(shape, lambda i, _n=n: (0,) * _n)


def _pick_batch_block(B):
    """Batch elements per grid step: batch rows to feed the MXU while keeping >=2
    grid iterations when possible so v7x's two TensorCores both get work."""
    for cand in (8, 4, 2):
        if B % cand == 0 and B // cand >= 2:
            return cand
    return 1


def resblock(x, p, pos, lnf_g, lnf_b, num_heads, bt, *, add_pos, final_ln):
    B, S, D = x.shape
    Dff = p["w_fc"].shape[1]
    assert B % bt == 0
    kernel = functools.partial(_resblock_kernel, num_heads=num_heads,
                               add_pos=add_pos, final_ln=final_ln)
    in_specs = [
        pl.BlockSpec((bt, S, D), lambda i: (i, 0, 0)),   # x
        _fs((S, D)),                                     # positional embedding
        _fs((1, D)), _fs((1, D)),                        # ln1 gamma/beta
        _fs((D, 3 * D)), _fs((1, 3 * D)),                # in_proj W (bf16) / b
        _fs((D, D)), _fs((1, D)),                        # out_proj W (bf16) / b
        _fs((1, D)), _fs((1, D)),                        # ln2 gamma/beta
        _fs((D, Dff)), _fs((1, Dff)),                    # mlp.c_fc W (bf16) / b
        _fs((Dff, D)), _fs((1, D)),                      # mlp.c_proj W (bf16) / b
        _fs((1, D)), _fs((1, D)),                        # ln_final gamma/beta
    ]
    return pl.pallas_call(
        kernel,
        out_shape=jax.ShapeDtypeStruct((B, S, D), jnp.float32),
        grid=(B // bt,),
        in_specs=in_specs,
        out_specs=pl.BlockSpec((bt, S, D), lambda i: (i, 0, 0)),
        scratch_shapes=[pltpu.VMEM((bt * S, D), jnp.bfloat16)],   # head-output staging
        compiler_params=pltpu.CompilerParams(
            dimension_semantics=("parallel",),
            vmem_limit_bytes=VMEM_LIMIT_BYTES),
    )(x, pos, p["ln1_g"], p["ln1_b"], p["w_qkv"], p["b_qkv"], p["w_out"], p["b_out"],
      p["ln2_g"], p["ln2_b"], p["w_fc"], p["b_fc"], p["w_proj"], p["b_proj"],
      lnf_g, lnf_b)


# ---------------------------------------------------------------------------
# Full forward (encode_with_transformer).  `tokens` are pre-tokenized ids.
# ---------------------------------------------------------------------------
def clip_text_embed(tokens, params, num_heads, batch_block=None):
    # TODO(synk): open_clip.tokenize (BPE) has no Pallas equivalent; takes token ids.
    B, S = tokens.shape
    x = params["token_embedding"][tokens].astype(jnp.float32)      # (B, S, D)
    bt = batch_block or _pick_batch_block(B)
    blocks = params["resblocks"]                 # layer='last' -> layer_idx=0 -> all blocks
    n = len(blocks)
    for i, lp in enumerate(blocks):
        x = resblock(x, lp, params["positional_embedding"],
                     params["ln_final_g"], params["ln_final_b"],
                     num_heads, bt,
                     add_pos=(i == 0),           # +positional_embedding fused into layer 0
                     final_ln=(i == n - 1))      # ln_final fused into the last layer
    return x


# ---------------------------------------------------------------------------
# Deterministic synthetic parameter init (weights bf16, biases/LN/embeddings f32)
# ---------------------------------------------------------------------------
def init_params(key, vocab, seq, width, num_layers, num_heads, mlp_ratio=4):
    dff = mlp_ratio * width
    dh = width // num_heads
    scale = 1.0 / math.sqrt(dh)
    n_keys = 2 + num_layers * 4
    keys = jax.random.split(key, n_keys)

    def nrm(k, shape):
        return (0.02 * jax.random.normal(k, shape)).astype(jnp.float32)

    params = {
        "token_embedding": nrm(keys[0], (vocab, width)),
        "positional_embedding": nrm(keys[1], (seq, width)),
        "ln_final_g": jnp.ones((1, width), jnp.float32),
        "ln_final_b": jnp.zeros((1, width), jnp.float32),
        "resblocks": [],
    }
    ki = 2
    for _ in range(num_layers):
        k0, k1, k2, k3 = keys[ki:ki + 4]
        ki += 4
        # Fold the 1/sqrt(dh) attention scale into the Q columns of the in-projection.
        # (A real checkpoint loader must also scale the Q part of b_qkv; zeros here.)
        w_qkv = nrm(k0, (width, 3 * width)).at[:, :width].multiply(scale)
        params["resblocks"].append({
            "ln1_g": jnp.ones((1, width), jnp.float32),
            "ln1_b": jnp.zeros((1, width), jnp.float32),
            "w_qkv": w_qkv.astype(jnp.bfloat16),
            "b_qkv": jnp.zeros((1, 3 * width), jnp.float32),
            "w_out": nrm(k1, (width, width)).astype(jnp.bfloat16),
            "b_out": jnp.zeros((1, width), jnp.float32),
            "ln2_g": jnp.ones((1, width), jnp.float32),
            "ln2_b": jnp.zeros((1, width), jnp.float32),
            "w_fc": nrm(k2, (width, dff)).astype(jnp.bfloat16),
            "b_fc": jnp.zeros((1, dff), jnp.float32),
            "w_proj": nrm(k3, (dff, width)).astype(jnp.bfloat16),
            "b_proj": jnp.zeros((1, width), jnp.float32),
        })
    return params


if __name__ == "__main__":
    # Small stand-in for ViT-L-14 text tower (real: width=768, heads=12, layers=12, seq=77).
    VOCAB, SEQ, WIDTH, HEADS, NLAYERS, BATCH = 64, 8, 32, 4, 2, 2

    key = jax.random.PRNGKey(0)
    kp, kt = jax.random.split(key)
    params = init_params(kp, VOCAB, SEQ, WIDTH, NLAYERS, HEADS)
    tokens = jax.random.randint(kt, (BATCH, SEQ), 0, VOCAB, dtype=jnp.int32)

    z = clip_text_embed(tokens, params, HEADS)
    z = jax.block_until_ready(z)

    assert z.shape == (BATCH, SEQ, WIDTH), z.shape
    assert z.dtype == jnp.float32
    assert bool(jnp.all(jnp.isfinite(z)))
    print("KERNEL_OK")
</pallas_src>

<mosaic_0001>
module attributes {stable_mosaic.version = 11 : i64} {
  func.func @_resblock_kernel(%arg0: i32, %arg1: memref<1x8x32xf32, #tpu.memory_space<vmem>>, %arg2: memref<8x32xf32, #tpu.memory_space<vmem>>, %arg3: memref<1x32xf32, #tpu.memory_space<vmem>>, %arg4: memref<1x32xf32, #tpu.memory_space<vmem>>, %arg5: memref<32x96xbf16, #tpu.memory_space<vmem>>, %arg6: memref<1x96xf32, #tpu.memory_space<vmem>>, %arg7: memref<32x32xbf16, #tpu.memory_space<vmem>>, %arg8: memref<1x32xf32, #tpu.memory_space<vmem>>, %arg9: memref<1x32xf32, #tpu.memory_space<vmem>>, %arg10: memref<1x32xf32, #tpu.memory_space<vmem>>, %arg11: memref<32x128xbf16, #tpu.memory_space<vmem>>, %arg12: memref<1x128xf32, #tpu.memory_space<vmem>>, %arg13: memref<128x32xbf16, #tpu.memory_space<vmem>>, %arg14: memref<1x32xf32, #tpu.memory_space<vmem>>, %arg15: memref<1x32xf32, #tpu.memory_space<vmem>>, %arg16: memref<1x32xf32, #tpu.memory_space<vmem>>, %arg17: memref<1x8x32xf32, #tpu.memory_space<vmem>>, %arg18: memref<8x32xbf16, #tpu.memory_space<vmem>>) attributes {dimension_semantics = [#tpu.dimension_semantics<parallel>], iteration_bounds = array<i64: 2>, scalar_prefetch = 0 : i64, scratch_operands = 1 : i64, tpu.core_type = #tpu.core_type<tc>, window_params = [{transform_indices = @transform_0, window_bounds = array<i64: 1, 8, 32>}, {pipeline_mode = #tpu.pipeline_mode<synchronous>, transform_indices = @transform_1, window_bounds = array<i64: 8, 32>}, {pipeline_mode = #tpu.pipeline_mode<synchronous>, transform_indices = @transform_2, window_bounds = array<i64: 1, 32>}, {pipeline_mode = #tpu.pipeline_mode<synchronous>, transform_indices = @transform_3, window_bounds = array<i64: 1, 32>}, {pipeline_mode = #tpu.pipeline_mode<synchronous>, transform_indices = @transform_4, window_bounds = array<i64: 32, 96>}, {pipeline_mode = #tpu.pipeline_mode<synchronous>, transform_indices = @transform_5, window_bounds = array<i64: 1, 96>}, {pipeline_mode = #tpu.pipeline_mode<synchronous>, transform_indices = @transform_6, window_bounds = array<i64: 32, 32>}, {pipeline_mode = #tpu.pipeline_mode<synchronous>, transform_indices = @transform_7, window_bounds = array<i64: 1, 32>}, {pipeline_mode = #tpu.pipeline_mode<synchronous>, transform_indices = @transform_8, window_bounds = array<i64: 1, 32>}, {pipeline_mode = #tpu.pipeline_mode<synchronous>, transform_indices = @transform_9, window_bounds = array<i64: 1, 32>}, {pipeline_mode = #tpu.pipeline_mode<synchronous>, transform_indices = @transform_10, window_bounds = array<i64: 32, 128>}, {pipeline_mode = #tpu.pipeline_mode<synchronous>, transform_indices = @transform_11, window_bounds = array<i64: 1, 128>}, {pipeline_mode = #tpu.pipeline_mode<synchronous>, transform_indices = @transform_12, window_bounds = array<i64: 128, 32>}, {pipeline_mode = #tpu.pipeline_mode<synchronous>, transform_indices = @transform_13, window_bounds = array<i64: 1, 32>}, {pipeline_mode = #tpu.pipeline_mode<synchronous>, transform_indices = @transform_14, window_bounds = array<i64: 1, 32>}, {pipeline_mode = #tpu.pipeline_mode<synchronous>, transform_indices = @transform_15, window_bounds = array<i64: 1, 32>}, {transform_indices = @transform_16, window_bounds = array<i64: 1, 8, 32>}]} {
    %c0 = arith.constant 0 : index
    %c0_0 = arith.constant 0 : index
    %c0_1 = arith.constant 0 : index
    %0 = vector.load %arg1[%c0, %c0_0, %c0_1] : memref<1x8x32xf32, #tpu.memory_space<vmem>>, vector<1x8x32xf32>
    %c0_2 = arith.constant 0 : index
    %c0_3 = arith.constant 0 : index
    %1 = vector.load %arg2[%c0_2, %c0_3] : memref<8x32xf32, #tpu.memory_space<vmem>>, vector<8x32xf32>
    %2 = vector.shape_cast %1 : vector<8x32xf32> to vector<1x8x32xf32>
    %3 = arith.addf %0, %2 : vector<1x8x32xf32>
    %4 = vector.shape_cast %3 : vector<1x8x32xf32> to vector<8x32xf32>
    %5 = tpu.iota {dimensions = array<i32: 0>} : vector<8x8xi32>
    %6 = tpu.iota {dimensions = array<i32: 1>} : vector<8x8xi32>
    %7 = arith.cmpi sgt, %6, %5 : vector<8x8xi32>
    %cst = arith.constant -1.000000e+30 : f32
    %cst_4 = arith.constant 0.000000e+00 : f32
    %8 = vector.broadcast %cst : f32 to vector<8x8xf32>
    %9 = vector.broadcast %cst_4 : f32 to vector<8x8xf32>
    %10 = arith.select %7, %8, %9 : vector<8x8xi1>, vector<8x8xf32>
    %c0_5 = arith.constant 0 : index
    %c0_6 = arith.constant 0 : index
    %11 = vector.load %arg3[%c0_5, %c0_6] : memref<1x32xf32, #tpu.memory_space<vmem>>, vector<1x32xf32>
    %c0_7 = arith.constant 0 : index
    %c0_8 = arith.constant 0 : index
    %12 = vector.load %arg4[%c0_7, %c0_8] : memref<1x32xf32, #tpu.memory_space<vmem>>, vector<1x32xf32>
    %cst_9 = arith.constant dense<0.000000e+00> : vector<8xf32>
    %13 = vector.multi_reduction <add>, %4, %cst_9 [1] : vector<8x32xf32> to vector<8xf32>
    %14 = vector.shape_cast %13 : vector<8xf32> to vector<8x1xf32>
    %cst_10 = arith.constant 3.200000e+01 : f32
    %15 = vector.broadcast %cst_10 : f32 to vector<8x1xf32>
    %16 = arith.divf %14, %15 : vector<8x1xf32>
    %17 = vector.broadcast %16 : vector<8x1xf32> to vector<8x32xf32>
    %18 = arith.subf %4, %17 : vector<8x32xf32>
    %19 = arith.mulf %18, %18 : vector<8x32xf32>
    %cst_11 = arith.constant dense<0.000000e+00> : vector<8xf32>
    %20 = vector.multi_reduction <add>, %19, %cst_11 [1] : vector<8x32xf32> to vector<8xf32>
    %21 = vector.shape_cast %20 : vector<8xf32> to vector<8x1xf32>
    %cst_12 = arith.constant 3.200000e+01 : f32
    %22 = vector.broadcast %cst_12 : f32 to vector<8x1xf32>
    %23 = arith.divf %21, %22 : vector<8x1xf32>
    %24 = vector.broadcast %16 : vector<8x1xf32> to vector<8x32xf32>
    %25 = arith.subf %4, %24 : vector<8x32xf32>
    %cst_13 = arith.constant 9.99999974E-6 : f32
    %26 = vector.broadcast %cst_13 : f32 to vector<8x1xf32>
    %27 = arith.addf %23, %26 : vector<8x1xf32>
    %28 = math.rsqrt %27 : vector<8x1xf32>
    %29 = vector.broadcast %28 : vector<8x1xf32> to vector<8x32xf32>
    %30 = arith.mulf %25, %29 : vector<8x32xf32>
    %31 = vector.broadcast %11 : vector<1x32xf32> to vector<8x32xf32>
    %32 = arith.mulf %30, %31 : vector<8x32xf32>
    %33 = vector.broadcast %12 : vector<1x32xf32> to vector<8x32xf32>
    %34 = arith.addf %32, %33 : vector<8x32xf32>
    %35 = arith.truncf %34 : vector<8x32xf32> to vector<8x32xbf16>
    %c0_14 = arith.constant 0 : index
    %c0_15 = arith.constant 0 : index
    %36 = vector.load %arg5[%c0_14, %c0_15] : memref<32x96xbf16, #tpu.memory_space<vmem>>, vector<32x96xbf16>
    %cst_16 = arith.constant dense<0.000000e+00> : vector<8x96xf32>
    %37 = tpu.matmul %35, %36, %cst_16 {dimension_numbers = #tpu.dot_dimension_numbers<[1], [0], [0], [1], [0, 0, 1, 1], [], []>} : vector<8x32xbf16>, vector<32x96xbf16>, vector<8x96xf32> -> vector<8x96xf32>
    %c0_17 = arith.constant 0 : index
    %c0_18 = arith.constant 0 : index
    %38 = vector.load %arg6[%c0_17, %c0_18] : memref<1x96xf32, #tpu.memory_space<vmem>>, vector<1x96xf32>
    %39 = vector.broadcast %38 : vector<1x96xf32> to vector<8x96xf32>
    %40 = arith.addf %37, %39 : vector<8x96xf32>
    %41 = vector.extract_strided_slice %40 {offsets = [0, 0], sizes = [8, 8], strides = [1, 1]} : vector<8x96xf32> to vector<8x8xf32>
    %42 = vector.extract_strided_slice %40 {offsets = [0, 32], sizes = [8, 8], strides = [1, 1]} : vector<8x96xf32> to vector<8x8xf32>
    %43 = vector.extract_strided_slice %40 {offsets = [0, 64], sizes = [8, 8], strides = [1, 1]} : vector<8x96xf32> to vector<8x8xf32>
    %44 = arith.truncf %41 : vector<8x8xf32> to vector<8x8xbf16>
    %45 = arith.truncf %42 : vector<8x8xf32> to vector<8x8xbf16>
    %cst_19 = arith.constant dense<0.000000e+00> : vector<8x8xf32>
    %46 = tpu.matmul %44, %45, %cst_19 {dimension_numbers = #tpu.dot_dimension_numbers<[1], [1], [0], [0], [0, 0, 1, 0], [], []>} : vector<8x8xbf16>, vector<8x8xbf16>, vector<8x8xf32> -> vector<8x8xf32>
    %47 = arith.addf %46, %10 : vector<8x8xf32>
    %cst_20 = arith.constant dense<0xFF800000> : vector<8xf32>
    %48 = vector.multi_reduction <maximumf>, %47, %cst_20 [1] : vector<8x8xf32> to vector<8xf32>
    %49 = vector.shape_cast %48 : vector<8xf32> to vector<8x1xf32>
    %50 = vector.broadcast %49 : vector<8x1xf32> to vector<8x8xf32>
    %51 = arith.subf %47, %50 : vector<8x8xf32>
    %52 = math.exp %51 : vector<8x8xf32>
    %cst_21 = arith.constant dense<0.000000e+00> : vector<8xf32>
    %53 = vector.multi_reduction <add>, %52, %cst_21 [1] : vector<8x8xf32> to vector<8xf32>
    %54 = vector.shape_cast %53 : vector<8xf32> to vector<8x1xf32>
    %55 = tpu.reciprocal %54 {approx = true} : vector<8x1xf32> -> vector<8x1xf32>
    %56 = vector.broadcast %55 : vector<8x1xf32> to vector<8x8xf32>
    %57 = arith.mulf %52, %56 : vector<8x8xf32>
    %58 = arith.truncf %57 : vector<8x8xf32> to vector<8x8xbf16>
    %59 = arith.truncf %43 : vector<8x8xf32> to vector<8x8xbf16>
    %cst_22 = arith.constant dense<0.000000e+00> : vector<8x8xf32>
    %60 = tpu.matmul %58, %59, %cst_22 {dimension_numbers = #tpu.dot_dimension_numbers<[1], [0], [0], [1], [0, 0, 1, 1], [], []>} : vector<8x8xbf16>, vector<8x8xbf16>, vector<8x8xf32> -> vector<8x8xf32>
    %61 = arith.truncf %60 : vector<8x8xf32> to vector<8x8xbf16>
    %c0_23 = arith.constant 0 : index
    %c0_24 = arith.constant 0 : index
    %62 = vector.load %arg18[%c0_23, %c0_24] : memref<8x32xbf16, #tpu.memory_space<vmem>>, vector<8x8xbf16>
    tpu.vector_store %arg18[%c0_23, %c0_24], %61 {strides = array<i32>} : memref<8x32xbf16, #tpu.memory_space<vmem>>, vector<8x8xbf16>,
    %63 = vector.extract_strided_slice %40 {offsets = [0, 8], sizes = [8, 8], strides = [1, 1]} : vector<8x96xf32> to vector<8x8xf32>
    %64 = vector.extract_strided_slice %40 {offsets = [0, 40], sizes = [8, 8], strides = [1, 1]} : vector<8x96xf32> to vector<8x8xf32>
    %65 = vector.extract_strided_slice %40 {offsets = [0, 72], sizes = [8, 8], strides = [1, 1]} : vector<8x96xf32> to vector<8x8xf32>
    %66 = arith.truncf %63 : vector<8x8xf32> to vector<8x8xbf16>
    %67 = arith.truncf %64 : vector<8x8xf32> to vector<8x8xbf16>
    %cst_25 = arith.constant dense<0.000000e+00> : vector<8x8xf32>
    %68 = tpu.matmul %66, %67, %cst_25 {dimension_numbers = #tpu.dot_dimension_numbers<[1], [1], [0], [0], [0, 0, 1, 0], [], []>} : vector<8x8xbf16>, vector<8x8xbf16>, vector<8x8xf32> -> vector<8x8xf32>
    %69 = arith.addf %68, %10 : vector<8x8xf32>
    %cst_26 = arith.constant dense<0xFF800000> : vector<8xf32>
    %70 = vector.multi_reduction <maximumf>, %69, %cst_26 [1] : vector<8x8xf32> to vector<8xf32>
    %71 = vector.shape_cast %70 : vector<8xf32> to vector<8x1xf32>
    %72 = vector.broadcast %71 : vector<8x1xf32> to vector<8x8xf32>
    %73 = arith.subf %69, %72 : vector<8x8xf32>
    %74 = math.exp %73 : vector<8x8xf32>
    %cst_27 = arith.constant dense<0.000000e+00> : vector<8xf32>
    %75 = vector.multi_reduction <add>, %74, %cst_27 [1] : vector<8x8xf32> to vector<8xf32>
    %76 = vector.shape_cast %75 : vector<8xf32> to vector<8x1xf32>
    %77 = tpu.reciprocal %76 {approx = true} : vector<8x1xf32> -> vector<8x1xf32>
    %78 = vector.broadcast %77 : vector<8x1xf32> to vector<8x8xf32>
    %79 = arith.mulf %74, %78 : vector<8x8xf32>
    %80 = arith.truncf %79 : vector<8x8xf32> to vector<8x8xbf16>
    %81 = arith.truncf %65 : vector<8x8xf32> to vector<8x8xbf16>
    %cst_28 = arith.constant dense<0.000000e+00> : vector<8x8xf32>
    %82 = tpu.matmul %80, %81, %cst_28 {dimension_numbers = #tpu.dot_dimension_numbers<[1], [0], [0], [1], [0, 0, 1, 1], [], []>} : vector<8x8xbf16>, vector<8x8xbf16>, vector<8x8xf32> -> vector<8x8xf32>
    %83 = arith.truncf %82 : vector<8x8xf32> to vector<8x8xbf16>
    %c0_29 = arith.constant 0 : index
    %c8 = arith.constant 8 : index
    %84 = vector.load %arg18[%c0_29, %c8] : memref<8x32xbf16, #tpu.memory_space<vmem>>, vector<8x8xbf16>
    tpu.vector_store %arg18[%c0_29, %c8], %83 {strides = array<i32>} : memref<8x32xbf16, #tpu.memory_space<vmem>>, vector<8x8xbf16>,
    %85 = vector.extract_strided_slice %40 {offsets = [0, 16], sizes = [8, 8], strides = [1, 1]} : vector<8x96xf32> to vector<8x8xf32>
    %86 = vector.extract_strided_slice %40 {offsets = [0, 48], sizes = [8, 8], strides = [1, 1]} : vector<8x96xf32> to vector<8x8xf32>
    %87 = vector.extract_strided_slice %40 {offsets = [0, 80], sizes = [8, 8], strides = [1, 1]} : vector<8x96xf32> to vector<8x8xf32>
    %88 = arith.truncf %85 : vector<8x8xf32> to vector<8x8xbf16>
    %89 = arith.truncf %86 : vector<8x8xf32> to vector<8x8xbf16>
    %cst_30 = arith.constant dense<0.000000e+00> : vector<8x8xf32>
    %90 = tpu.matmul %88, %89, %cst_30 {dimension_numbers = #tpu.dot_dimension_numbers<[1], [1], [0], [0], [0, 0, 1, 0], [], []>} : vector<8x8xbf16>, vector<8x8xbf16>, vector<8x8xf32> -> vector<8x8xf32>
    %91 = arith.addf %90, %10 : vector<8x8xf32>
    %cst_31 = arith.constant dense<0xFF800000> : vector<8xf32>
    %92 = vector.multi_reduction <maximumf>, %91, %cst_31 [1] : vector<8x8xf32> to vector<8xf32>
    %93 = vector.shape_cast %92 : vector<8xf32> to vector<8x1xf32>
    %94 = vector.broadcast %93 : vector<8x1xf32> to vector<8x8xf32>
    %95 = arith.subf %91, %94 : vector<8x8xf32>
    %96 = math.exp %95 : vector<8x8xf32>
    %cst_32 = arith.constant dense<0.000000e+00> : vector<8xf32>
    %97 = vector.multi_reduction <add>, %96, %cst_32 [1] : vector<8x8xf32> to vector<8xf32>
    %98 = vector.shape_cast %97 : vector<8xf32> to vector<8x1xf32>
    %99 = tpu.reciprocal %98 {approx = true} : vector<8x1xf32> -> vector<8x1xf32>
    %100 = vector.broadcast %99 : vector<8x1xf32> to vector<8x8xf32>
    %101 = arith.mulf %96, %100 : vector<8x8xf32>
    %102 = arith.truncf %101 : vector<8x8xf32> to vector<8x8xbf16>
    %103 = arith.truncf %87 : vector<8x8xf32> to vector<8x8xbf16>
    %cst_33 = arith.constant dense<0.000000e+00> : vector<8x8xf32>
    %104 = tpu.matmul %102, %103, %cst_33 {dimension_numbers = #tpu.dot_dimension_numbers<[1], [0], [0], [1], [0, 0, 1, 1], [], []>} : vector<8x8xbf16>, vector<8x8xbf16>, vector<8x8xf32> -> vector<8x8xf32>
    %105 = arith.truncf %104 : vector<8x8xf32> to vector<8x8xbf16>
    %c0_34 = arith.constant 0 : index
    %c16 = arith.constant 16 : index
    %106 = vector.load %arg18[%c0_34, %c16] : memref<8x32xbf16, #tpu.memory_space<vmem>>, vector<8x8xbf16>
    tpu.vector_store %arg18[%c0_34, %c16], %105 {strides = array<i32>} : memref<8x32xbf16, #tpu.memory_space<vmem>>, vector<8x8xbf16>,
    %107 = vector.extract_strided_slice %40 {offsets = [0, 24], sizes = [8, 8], strides = [1, 1]} : vector<8x96xf32> to vector<8x8xf32>
    %108 = vector.extract_strided_slice %40 {offsets = [0, 56], sizes = [8, 8], strides = [1, 1]} : vector<8x96xf32> to vector<8x8xf32>
    %109 = vector.extract_strided_slice %40 {offsets = [0, 88], sizes = [8, 8], strides = [1, 1]} : vector<8x96xf32> to vector<8x8xf32>
    %110 = arith.truncf %107 : vector<8x8xf32> to vector<8x8xbf16>
    %111 = arith.truncf %108 : vector<8x8xf32> to vector<8x8xbf16>
    %cst_35 = arith.constant dense<0.000000e+00> : vector<8x8xf32>
    %112 = tpu.matmul %110, %111, %cst_35 {dimension_numbers = #tpu.dot_dimension_numbers<[1], [1], [0], [0], [0, 0, 1, 0], [], []>} : vector<8x8xbf16>, vector<8x8xbf16>, vector<8x8xf32> -> vector<8x8xf32>
    %113 = arith.addf %112, %10 : vector<8x8xf32>
    %cst_36 = arith.constant dense<0xFF800000> : vector<8xf32>
    %114 = vector.multi_reduction <maximumf>, %113, %cst_36 [1] : vector<8x8xf32> to vector<8xf32>
    %115 = vector.shape_cast %114 : vector<8xf32> to vector<8x1xf32>
    %116 = vector.broadcast %115 : vector<8x1xf32> to vector<8x8xf32>
    %117 = arith.subf %113, %116 : vector<8x8xf32>
    %118 = math.exp %117 : vector<8x8xf32>
    %cst_37 = arith.constant dense<0.000000e+00> : vector<8xf32>
    %119 = vector.multi_reduction <add>, %118, %cst_37 [1] : vector<8x8xf32> to vector<8xf32>
    %120 = vector.shape_cast %119 : vector<8xf32> to vector<8x1xf32>
    %121 = tpu.reciprocal %120 {approx = true} : vector<8x1xf32> -> vector<8x1xf32>
    %122 = vector.broadcast %121 : vector<8x1xf32> to vector<8x8xf32>
    %123 = arith.mulf %118, %122 : vector<8x8xf32>
    %124 = arith.truncf %123 : vector<8x8xf32> to vector<8x8xbf16>
    %125 = arith.truncf %109 : vector<8x8xf32> to vector<8x8xbf16>
    %cst_38 = arith.constant dense<0.000000e+00> : vector<8x8xf32>
    %126 = tpu.matmul %124, %125, %cst_38 {dimension_numbers = #tpu.dot_dimension_numbers<[1], [0], [0], [1], [0, 0, 1, 1], [], []>} : vector<8x8xbf16>, vector<8x8xbf16>, vector<8x8xf32> -> vector<8x8xf32>
    %127 = arith.truncf %126 : vector<8x8xf32> to vector<8x8xbf16>
    %c0_39 = arith.constant 0 : index
    %c24 = arith.constant 24 : index
    %128 = vector.load %arg18[%c0_39, %c24] : memref<8x32xbf16, #tpu.memory_space<vmem>>, vector<8x8xbf16>
    tpu.vector_store %arg18[%c0_39, %c24], %127 {strides = array<i32>} : memref<8x32xbf16, #tpu.memory_space<vmem>>, vector<8x8xbf16>,
    %c0_40 = arith.constant 0 : index
    %c0_41 = arith.constant 0 : index
    %129 = vector.load %arg18[%c0_40, %c0_41] : memref<8x32xbf16, #tpu.memory_space<vmem>>, vector<8x32xbf16>
    %c0_42 = arith.constant 0 : index
    %c0_43 = arith.constant 0 : index
    %130 = vector.load %arg7[%c0_42, %c0_43] : memref<32x32xbf16, #tpu.memory_space<vmem>>, vector<32x32xbf16>
    %cst_44 = arith.constant dense<0.000000e+00> : vector<8x32xf32>
    %131 = tpu.matmul %129, %130, %cst_44 {dimension_numbers = #tpu.dot_dimension_numbers<[1], [0], [0], [1], [0, 0, 1, 1], [], []>} : vector<8x32xbf16>, vector<32x32xbf16>, vector<8x32xf32> -> vector<8x32xf32>
    %c0_45 = arith.constant 0 : index
    %c0_46 = arith.constant 0 : index
    %132 = vector.load %arg8[%c0_45, %c0_46] : memref<1x32xf32, #tpu.memory_space<vmem>>, vector<1x32xf32>
    %133 = vector.broadcast %132 : vector<1x32xf32> to vector<8x32xf32>
    %134 = arith.addf %131, %133 : vector<8x32xf32>
    %135 = arith.addf %4, %134 : vector<8x32xf32>
    %c0_47 = arith.constant 0 : index
    %c0_48 = arith.constant 0 : index
    %136 = vector.load %arg9[%c0_47, %c0_48] : memref<1x32xf32, #tpu.memory_space<vmem>>, vector<1x32xf32>
    %c0_49 = arith.constant 0 : index
    %c0_50 = arith.constant 0 : index
    %137 = vector.load %arg10[%c0_49, %c0_50] : memref<1x32xf32, #tpu.memory_space<vmem>>, vector<1x32xf32>
    %cst_51 = arith.constant dense<0.000000e+00> : vector<8xf32>
    %138 = vector.multi_reduction <add>, %135, %cst_51 [1] : vector<8x32xf32> to vector<8xf32>
    %139 = vector.shape_cast %138 : vector<8xf32> to vector<8x1xf32>
    %cst_52 = arith.constant 3.200000e+01 : f32
    %140 = vector.broadcast %cst_52 : f32 to vector<8x1xf32>
    %141 = arith.divf %139, %140 : vector<8x1xf32>
    %142 = vector.broadcast %141 : vector<8x1xf32> to vector<8x32xf32>
    %143 = arith.subf %135, %142 : vector<8x32xf32>
    %144 = arith.mulf %143, %143 : vector<8x32xf32>
    %cst_53 = arith.constant dense<0.000000e+00> : vector<8xf32>
    %145 = vector.multi_reduction <add>, %144, %cst_53 [1] : vector<8x32xf32> to vector<8xf32>
    %146 = vector.shape_cast %145 : vector<8xf32> to vector<8x1xf32>
    %cst_54 = arith.constant 3.200000e+01 : f32
    %147 = vector.broadcast %cst_54 : f32 to vector<8x1xf32>
    %148 = arith.divf %146, %147 : vector<8x1xf32>
    %149 = vector.broadcast %141 : vector<8x1xf32> to vector<8x32xf32>
    %150 = arith.subf %135, %149 : vector<8x32xf32>
    %cst_55 = arith.constant 9.99999974E-6 : f32
    %151 = vector.broadcast %cst_55 : f32 to vector<8x1xf32>
    %152 = arith.addf %148, %151 : vector<8x1xf32>
    %153 = math.rsqrt %152 : vector<8x1xf32>
    %154 = vector.broadcast %153 : vector<8x1xf32> to vector<8x32xf32>
    %155 = arith.mulf %150, %154 : vector<8x32xf32>
    %156 = vector.broadcast %136 : vector<1x32xf32> to vector<8x32xf32>
    %157 = arith.mulf %155, %156 : vector<8x32xf32>
    %158 = vector.broadcast %137 : vector<1x32xf32> to vector<8x32xf32>
    %159 = arith.addf %157, %158 : vector<8x32xf32>
    %160 = arith.truncf %159 : vector<8x32xf32> to vector<8x32xbf16>
    %c0_56 = arith.constant 0 : index
    %c0_57 = arith.constant 0 : index
    %161 = vector.load %arg11[%c0_56, %c0_57] : memref<32x128xbf16, #tpu.memory_space<vmem>>, vector<32x128xbf16>
    %cst_58 = arith.constant dense<0.000000e+00> : vector<8x128xf32>
    %162 = tpu.matmul %160, %161, %cst_58 {dimension_numbers = #tpu.dot_dimension_numbers<[1], [0], [0], [1], [0, 0, 1, 1], [], []>} : vector<8x32xbf16>, vector<32x128xbf16>, vector<8x128xf32> -> vector<8x128xf32>
    %c0_59 = arith.constant 0 : index
    %c0_60 = arith.constant 0 : index
    %163 = vector.load %arg12[%c0_59, %c0_60] : memref<1x128xf32, #tpu.memory_space<vmem>>, vector<1x128xf32>
    %164 = vector.broadcast %163 : vector<1x128xf32> to vector<8x128xf32>
    %165 = arith.addf %162, %164 : vector<8x128xf32>
    %166 = arith.mulf %165, %165 : vector<8x128xf32>
    %167 = arith.mulf %165, %166 : vector<8x128xf32>
    %cst_61 = arith.constant 4.471500e-02 : f32
    %168 = vector.broadcast %cst_61 : f32 to vector<8x128xf32>
    %169 = arith.mulf %168, %167 : vector<8x128xf32>
    %170 = arith.addf %165, %169 : vector<8x128xf32>
    %cst_62 = arith.constant 0.797884583 : f32
    %171 = vector.broadcast %cst_62 : f32 to vector<8x128xf32>
    %172 = arith.mulf %171, %170 : vector<8x128xf32>
    %173 = math.tanh %172 : vector<8x128xf32>
    %cst_63 = arith.constant 1.000000e+00 : f32
    %174 = vector.broadcast %cst_63 : f32 to vector<8x128xf32>
    %175 = arith.addf %174, %173 : vector<8x128xf32>
    %cst_64 = arith.constant 5.000000e-01 : f32
    %176 = vector.broadcast %cst_64 : f32 to vector<8x128xf32>
    %177 = arith.mulf %176, %175 : vector<8x128xf32>
    %178 = arith.mulf %165, %177 : vector<8x128xf32>
    %179 = arith.truncf %178 : vector<8x128xf32> to vector<8x128xbf16>
    %c0_65 = arith.constant 0 : index
    %c0_66 = arith.constant 0 : index
    %180 = vector.load %arg13[%c0_65, %c0_66] : memref<128x32xbf16, #tpu.memory_space<vmem>>, vector<128x32xbf16>
    %cst_67 = arith.constant dense<0.000000e+00> : vector<8x32xf32>
    %181 = tpu.matmul %179, %180, %cst_67 {dimension_numbers = #tpu.dot_dimension_numbers<[1], [0], [0], [1], [0, 0, 1, 1], [], []>} : vector<8x128xbf16>, vector<128x32xbf16>, vector<8x32xf32> -> vector<8x32xf32>
    %c0_68 = arith.constant 0 : index
    %c0_69 = arith.constant 0 : index
    %182 = vector.load %arg14[%c0_68, %c0_69] : memref<1x32xf32, #tpu.memory_space<vmem>>, vector<1x32xf32>
    %183 = vector.broadcast %182 : vector<1x32xf32> to vector<8x32xf32>
    %184 = arith.addf %181, %183 : vector<8x32xf32>
    %185 = arith.addf %135, %184 : vector<8x32xf32>
    %186 = vector.shape_cast %185 : vector<8x32xf32> to vector<1x8x32xf32>
    %c0_70 = arith.constant 0 : index
    %c0_71 = arith.constant 0 : index
    %c0_72 = arith.constant 0 : index
    %187 = vector.load %arg17[%c0_70, %c0_71, %c0_72] : memref<1x8x32xf32, #tpu.memory_space<vmem>>, vector<1x8x32xf32>
    tpu.vector_store %arg17[%c0_70, %c0_71, %c0_72], %186 {strides = array<i32>} : memref<1x8x32xf32, #tpu.memory_space<vmem>>, vector<1x8x32xf32>,
    return
  }
  func.func @transform_0(%arg0: i32) -> (i32, i32, i32) {
    %c0_i32 = arith.constant 0 : i32
    %c0_i32_0 = arith.constant 0 : i32
    %c0_i32_1 = arith.constant 0 : i32
    return %arg0, %c0_i32, %c0_i32_0 : i32, i32, i32
  }
  func.func @transform_1(%arg0: i32) -> (i32, i32) {
    %c0_i32 = arith.constant 0 : i32
    %c0_i32_0 = arith.constant 0 : i32
    %c0_i32_1 = arith.constant 0 : i32
    return %c0_i32, %c0_i32_0 : i32, i32
  }
  func.func @transform_2(%arg0: i32) -> (i32, i32) {
    %c0_i32 = arith.constant 0 : i32
    %c0_i32_0 = arith.constant 0 : i32
    %c0_i32_1 = arith.constant 0 : i32
    return %c0_i32, %c0_i32_0 : i32, i32
  }
  func.func @transform_3(%arg0: i32) -> (i32, i32) {
    %c0_i32 = arith.constant 0 : i32
    %c0_i32_0 = arith.constant 0 : i32
    %c0_i32_1 = arith.constant 0 : i32
    return %c0_i32, %c0_i32_0 : i32, i32
  }
  func.func @transform_4(%arg0: i32) -> (i32, i32) {
    %c0_i32 = arith.constant 0 : i32
    %c0_i32_0 = arith.constant 0 : i32
    %c0_i32_1 = arith.constant 0 : i32
    return %c0_i32, %c0_i32_0 : i32, i32
  }
  func.func @transform_5(%arg0: i32) -> (i32, i32) {
    %c0_i32 = arith.constant 0 : i32
    %c0_i32_0 = arith.constant 0 : i32
    %c0_i32_1 = arith.constant 0 : i32
    return %c0_i32, %c0_i32_0 : i32, i32
  }
  func.func @transform_6(%arg0: i32) -> (i32, i32) {
    %c0_i32 = arith.constant 0 : i32
    %c0_i32_0 = arith.constant 0 : i32
    %c0_i32_1 = arith.constant 0 : i32
    return %c0_i32, %c0_i32_0 : i32, i32
  }
  func.func @transform_7(%arg0: i32) -> (i32, i32) {
    %c0_i32 = arith.constant 0 : i32
    %c0_i32_0 = arith.constant 0 : i32
    %c0_i32_1 = arith.constant 0 : i32
    return %c0_i32, %c0_i32_0 : i32, i32
  }
  func.func @transform_8(%arg0: i32) -> (i32, i32) {
    %c0_i32 = arith.constant 0 : i32
    %c0_i32_0 = arith.constant 0 : i32
    %c0_i32_1 = arith.constant 0 : i32
    return %c0_i32, %c0_i32_0 : i32, i32
  }
  func.func @transform_9(%arg0: i32) -> (i32, i32) {
    %c0_i32 = arith.constant 0 : i32
    %c0_i32_0 = arith.constant 0 : i32
    %c0_i32_1 = arith.constant 0 : i32
    return %c0_i32, %c0_i32_0 : i32, i32
  }
  func.func @transform_10(%arg0: i32) -> (i32, i32) {
    %c0_i32 = arith.constant 0 : i32
    %c0_i32_0 = arith.constant 0 : i32
    %c0_i32_1 = arith.constant 0 : i32
    return %c0_i32, %c0_i32_0 : i32, i32
  }
  func.func @transform_11(%arg0: i32) -> (i32, i32) {
    %c0_i32 = arith.constant 0 : i32
    %c0_i32_0 = arith.constant 0 : i32
    %c0_i32_1 = arith.constant 0 : i32
    return %c0_i32, %c0_i32_0 : i32, i32
  }
  func.func @transform_12(%arg0: i32) -> (i32, i32) {
    %c0_i32 = arith.constant 0 : i32
    %c0_i32_0 = arith.constant 0 : i32
    %c0_i32_1 = arith.constant 0 : i32
    return %c0_i32, %c0_i32_0 : i32, i32
  }
  func.func @transform_13(%arg0: i32) -> (i32, i32) {
    %c0_i32 = arith.constant 0 : i32
    %c0_i32_0 = arith.constant 0 : i32
    %c0_i32_1 = arith.constant 0 : i32
    return %c0_i32, %c0_i32_0 : i32, i32
  }
  func.func @transform_14(%arg0: i32) -> (i32, i32) {
    %c0_i32 = arith.constant 0 : i32
    %c0_i32_0 = arith.constant 0 : i32
    %c0_i32_1 = arith.constant 0 : i32
    return %c0_i32, %c0_i32_0 : i32, i32
  }
  func.func @transform_15(%arg0: i32) -> (i32, i32) {
    %c0_i32 = arith.constant 0 : i32
    %c0_i32_0 = arith.constant 0 : i32
    %c0_i32_1 = arith.constant 0 : i32
    return %c0_i32, %c0_i32_0 : i32, i32
  }
  func.func @transform_16(%arg0: i32) -> (i32, i32, i32) {
    %c0_i32 = arith.constant 0 : i32
    %c0_i32_0 = arith.constant 0 : i32
    %c0_i32_1 = arith.constant 0 : i32
    return %arg0, %c0_i32, %c0_i32_0 : i32, i32, i32
  }
}

</mosaic_0001>

<llo_original>
// kernel: tpu_custom_call.1
$region0: #{tpu_custom_call.1}
  #allocation0 [shape = 'u32[]', space=smem, size = 0x4, offset = 0x4, fixed_abs, tag = 'smem constant byte address 0x4 - core index']
  #allocation1 [shape = 'u32[72,128]{1,0:T(1,128)}', space=vmem, size = 0x9000, scoped, tag = 'internal scratch']
  #allocation2 [shape = 'bf16[8,32]{1,0:T(8,128)(2,1)}', space=vmem, size = 0x800, scoped, tag = 'scratch operand']
  %s0 = inlined_call_operand.vmem [shape: f32[2,8,32], index: 0, kind: input, shape index: {}]
  %s1 = inlined_call_operand.vmem [shape: f32[8,32], index: 1, kind: input, shape index: {}]
  %s2 = inlined_call_operand.vmem [shape: f32[1,32], index: 2, kind: input, shape index: {}]
  %s3 = inlined_call_operand.vmem [shape: f32[1,32], index: 3, kind: input, shape index: {}]
  %s4 = inlined_call_operand.vmem [shape: bf16[32,96], index: 4, kind: input, shape index: {}]
  %s5 = inlined_call_operand.vmem [shape: f32[1,96], index: 5, kind: input, shape index: {}]
  %s6 = inlined_call_operand.vmem [shape: bf16[32,32], index: 6, kind: input, shape index: {}]
  %s7 = inlined_call_operand.vmem [shape: f32[1,32], index: 7, kind: input, shape index: {}]
  %s8 = inlined_call_operand.vmem [shape: f32[1,32], index: 8, kind: input, shape index: {}]
  %s9 = inlined_call_operand.vmem [shape: f32[1,32], index: 9, kind: input, shape index: {}]
  %s10 = inlined_call_operand.vmem [shape: bf16[32,128], index: 10, kind: input, shape index: {}]
  %s11 = inlined_call_operand.vmem [shape: f32[1,128], index: 11, kind: input, shape index: {}]
  %s12 = inlined_call_operand.vmem [shape: bf16[128,32], index: 12, kind: input, shape index: {}]
  %s13 = inlined_call_operand.vmem [shape: f32[1,32], index: 13, kind: input, shape index: {}]
  %s14 = inlined_call_operand.vmem [shape: f32[1,32], index: 14, kind: input, shape index: {}]
  %s15 = inlined_call_operand.vmem [shape: f32[1,32], index: 15, kind: input, shape index: {}]
  %s16 = inlined_call_operand.hbm [shape: f32[2,8,32], index: 16, kind: output, shape index: {}]
  %s17 = sld [smem:[#allocation0]]
  $region97: #{tpu_custom_call.1} parent=0
    _
  %s19 = ssub.s32 1, %s17
  %s20 = scalar_select 0, %s19, %s17
  $region1: #{tpu_custom_call.1} parent=0
    #allocation3 [shape = 'u8[8192]{0}', space=vmem, size = 0x2000, scoped, tag = 'output window, operand 0']
    #allocation4 [shape = 's32[2]{0}', space=sflag, size = 0x8, scoped, tag = 'scoped memory for tpu_custom_call.1']
    %21 = vsyncpa [#allocation4], 0
    %s22 = scalar_lea.sflag [#allocation4], 1
    %23 = vsyncpa %s22, 0
    loop: start=0, step=1, limit=4
    $region2: #{tpu_custom_call.1} parent=1 // loop_pre_header
      _
    $region3: #{tpu_custom_call.1} parent=1 // loop_header
      %s25 = sphi 0, %s29
      %p26 = scmp.ge.s32.totalorder %s25, 4
      %s35 = sphi 0, %s37
      %s38 = sphi 0, %s35
      %s39 = sphi 0, %s38
      %s55 = sphi 0, %s39
      %s59 = sphi 0, %s59
      %s61 = sphi 0, %s59
      %s62 = sphi 0, %s61
      %s76 = sphi 0, %s62
      %s80 = sphi 0, %s80
      %s82 = sphi 0, %s80
      %s83 = sphi 0, %s82
      %s97 = sphi 0, %s83
      %s101 = sphi 0, %s101
      %s103 = sphi 0, %s101
      %s104 = sphi 0, %s103
      %s118 = sphi 0, %s104
      %s122 = sphi 0, %s122
      %s124 = sphi 0, %s122
      %s125 = sphi 0, %s124
      %s139 = sphi 0, %s125
      %s143 = sphi 0, %s143
      %s145 = sphi 0, %s143
      %s146 = sphi 0, %s145
      %s160 = sphi 0, %s146
      %s164 = sphi 0, %s164
      %s166 = sphi 0, %s164
      %s167 = sphi 0, %s166
      %s181 = sphi 0, %s167
      %s185 = sphi 0, %s185
      %s187 = sphi 0, %s185
      %s188 = sphi 0, %s187
      %s202 = sphi 0, %s188
      %s206 = sphi 0, %s206
      %s208 = sphi 0, %s206
      %s209 = sphi 0, %s208
      %s223 = sphi 0, %s209
      %s227 = sphi 0, %s227
      %s229 = sphi 0, %s227
      %s230 = sphi 0, %s229
      %s244 = sphi 0, %s230
      %s248 = sphi 0, %s248
      %s250 = sphi 0, %s248
      %s251 = sphi 0, %s250
      %s265 = sphi 0, %s251
      %s269 = sphi 0, %s269
      %s271 = sphi 0, %s269
      %s272 = sphi 0, %s271
      %s286 = sphi 0, %s272
      %s290 = sphi 0, %s290
      %s292 = sphi 0, %s290
      %s293 = sphi 0, %s292
      %s307 = sphi 0, %s293
      %s311 = sphi 0, %s311
      %s313 = sphi 0, %s311
      %s314 = sphi 0, %s313
      %s328 = sphi 0, %s314
      %s332 = sphi 0, %s332
      %s334 = sphi 0, %s332
      %s335 = sphi 0, %s334
      %s349 = sphi 0, %s335
      %s353 = sphi 0, %s353
      %s355 = sphi 0, %s353
      %s356 = sphi 0, %s355
      %s370 = sphi 0, %s356
      %s376 = sphi 0, %s378
      %s379 = sphi 0, %s376
      %s380 = sphi 0, %s379
      %s396 = sphi 0, %s380
    $region4: #{tpu_custom_call.1} parent=1 // loop_header_branch
      %28 = sbr.rel (%p26) target = $region8
    $region5: #{tpu_custom_call.1} parent=1 // loop_body
      %s30 = ssub.s32 %s25, 1
      %s31 = ssub.s32 %s25, 2
      %s32 = sadd.s32 %s25, 1
      %s33 = ssub.s32 %s25, %s32
      %p34 = scmp.eq.s32.totalorder %s33, 0
      %s36 = sadd.s32 %s35, 1
      %s37 = scalar_select %p34, %s35, %s36
      %p40 = pneg %p34
      %p41 = scmp.eq.s32.totalorder %s25, 1
      %p42 = por %p40, %p41
      %p43 = scmp.ne.s32.totalorder %s35, %s38
      %p44 = scmp.eq.s32.totalorder %s25, 0
      %p45 = por %p43, %p44
      %p46 = scmp.ne.s32.totalorder %s35, %s38
      %p47 = scmp.eq.s32.totalorder %s30, 1
      %p48 = por %p46, %p47
      %p49 = scmp.ne.s32.totalorder %s38, %s39
      %p50 = scmp.eq.s32.totalorder %s30, 0
      %p51 = por %p49, %p50
      %p52 = scmp.ne.s32.totalorder %s38, %s39
      %p53 = scmp.eq.s32.totalorder %s31, 1
      %p54 = por %p52, %p53
      %p56 = scmp.ne.s32.totalorder %s39, %s55
      %p57 = scmp.eq.s32.totalorder %s31, 0
      %p58 = por %p56, %p57
      %s60 = sadd.s32 %s59, 1
      %p63 = scmp.eq.s32.totalorder %s25, 1
      %p64 = scmp.ne.s32.totalorder %s59, %s61
      %p65 = scmp.eq.s32.totalorder %s25, 0
      %p66 = por %p64, %p65
      %p67 = scmp.ne.s32.totalorder %s59, %s61
      %p68 = scmp.eq.s32.totalorder %s30, 1
      %p69 = por %p67, %p68
      %p70 = scmp.ne.s32.totalorder %s61, %s62
      %p71 = scmp.eq.s32.totalorder %s30, 0
      %p72 = por %p70, %p71
      %p73 = scmp.ne.s32.totalorder %s61, %s62
      %p74 = scmp.eq.s32.totalorder %s31, 1
      %p75 = por %p73, %p74
      %p77 = scmp.ne.s32.totalorder %s62, %s76
      %p78 = scmp.eq.s32.totalorder %s31, 0
      %p79 = por %p77, %p78
      %s81 = sadd.s32 %s80, 1
      %p84 = scmp.eq.s32.totalorder %s25, 1
      %p85 = scmp.ne.s32.totalorder %s80, %s82
      %p86 = scmp.eq.s32.totalorder %s25, 0
      %p87 = por %p85, %p86
      %p88 = scmp.ne.s32.totalorder %s80, %s82
      %p89 = scmp.eq.s32.totalorder %s30, 1
      %p90 = por %p88, %p89
      %p91 = scmp.ne.s32.totalorder %s82, %s83
      %p92 = scmp.eq.s32.totalorder %s30, 0
      %p93 = por %p91, %p92
      %p94 = scmp.ne.s32.totalorder %s82, %s83
      %p95 = scmp.eq.s32.totalorder %s31, 1
      %p96 = por %p94, %p95
      %p98 = scmp.ne.s32.totalorder %s83, %s97
      %p99 = scmp.eq.s32.totalorder %s31, 0
      %p100 = por %p98, %p99
      %s102 = sadd.s32 %s101, 1
      %p105 = scmp.eq.s32.totalorder %s25, 1
      %p106 = scmp.ne.s32.totalorder %s101, %s103
      %p107 = scmp.eq.s32.totalorder %s25, 0
      %p108 = por %p106, %p107
      %p109 = scmp.ne.s32.totalorder %s101, %s103
      %p110 = scmp.eq.s32.totalorder %s30, 1
      %p111 = por %p109, %p110
      %p112 = scmp.ne.s32.totalorder %s103, %s104
      %p113 = scmp.eq.s32.totalorder %s30, 0
      %p114 = por %p112, %p113
      %p115 = scmp.ne.s32.totalorder %s103, %s104
      %p116 = scmp.eq.s32.totalorder %s31, 1
      %p117 = por %p115, %p116
      %p119 = scmp.ne.s32.totalorder %s104, %s118
      %p120 = scmp.eq.s32.totalorder %s31, 0
      %p121 = por %p119, %p120
      %s123 = sadd.s32 %s122, 1
      %p126 = scmp.eq.s32.totalorder %s25, 1
      %p127 = scmp.ne.s32.totalorder %s122, %s124
      %p128 = scmp.eq.s32.totalorder %s25, 0
      %p129 = por %p127, %p128
      %p130 = scmp.ne.s32.totalorder %s122, %s124
      %p131 = scmp.eq.s32.totalorder %s30, 1
      %p132 = por %p130, %p131
      %p133 = scmp.ne.s32.totalorder %s124, %s125
      %p134 = scmp.eq.s32.totalorder %s30, 0
      %p135 = por %p133, %p134
      %p136 = scmp.ne.s32.totalorder %s124, %s125
      %p137 = scmp.eq.s32.totalorder %s31, 1
      %p138 = por %p136, %p137
      %p140 = scmp.ne.s32.totalorder %s125, %s139
      %p141 = scmp.eq.s32.totalorder %s31, 0
      %p142 = por %p140, %p141
      %s144 = sadd.s32 %s143, 1
      %p147 = scmp.eq.s32.totalorder %s25, 1
      %p148 = scmp.ne.s32.totalorder %s143, %s145
      %p149 = scmp.eq.s32.totalorder %s25, 0
      %p150 = por %p148, %p149
      %p151 = scmp.ne.s32.totalorder %s143, %s145
      %p152 = scmp.eq.s32.totalorder %s30, 1
      %p153 = por %p151, %p152
      %p154 = scmp.ne.s32.totalorder %s145, %s146
      %p155 = scmp.eq.s32.totalorder %s30, 0
      %p156 = por %p154, %p155
      %p157 = scmp.ne.s32.totalorder %s145, %s146
      %p158 = scmp.eq.s32.totalorder %s31, 1
      %p159 = por %p157, %p158
      %p161 = scmp.ne.s32.totalorder %s146, %s160
      %p162 = scmp.eq.s32.totalorder %s31, 0
      %p163 = por %p161, %p162
      %s165 = sadd.s32 %s164, 1
      %p168 = scmp.eq.s32.totalorder %s25, 1
      %p169 = scmp.ne.s32.totalorder %s164, %s166
      %p170 = scmp.eq.s32.totalorder %s25, 0
      %p171 = por %p169, %p170
      %p172 = scmp.ne.s32.totalorder %s164, %s166
      %p173 = scmp.eq.s32.totalorder %s30, 1
      %p174 = por %p172, %p173
      %p175 = scmp.ne.s32.totalorder %s166, %s167
      %p176 = scmp.eq.s32.totalorder %s30, 0
      %p177 = por %p175, %p176
      %p178 = scmp.ne.s32.totalorder %s166, %s167
      %p179 = scmp.eq.s32.totalorder %s31, 1
      %p180 = por %p178, %p179
      %p182 = scmp.ne.s32.totalorder %s167, %s181
      %p183 = scmp.eq.s32.totalorder %s31, 0
      %p184 = por %p182, %p183
      %s186 = sadd.s32 %s185, 1
      %p189 = scmp.eq.s32.totalorder %s25, 1
      %p190 = scmp.ne.s32.totalorder %s185, %s187
      %p191 = scmp.eq.s32.totalorder %s25, 0
      %p192 = por %p190, %p191
      %p193 = scmp.ne.s32.totalorder %s185, %s187
      %p194 = scmp.eq.s32.totalorder %s30, 1
      %p195 = por %p193, %p194
      %p196 = scmp.ne.s32.totalorder %s187, %s188
      %p197 = scmp.eq.s32.totalorder %s30, 0
      %p198 = por %p196, %p197
      %p199 = scmp.ne.s32.totalorder %s187, %s188
      %p200 = scmp.eq.s32.totalorder %s31, 1
      %p201 = por %p199, %p200
      %p203 = scmp.ne.s32.totalorder %s188, %s202
      %p204 = scmp.eq.s32.totalorder %s31, 0
      %p205 = por %p203, %p204
      %s207 = sadd.s32 %s206, 1
      %p210 = scmp.eq.s32.totalorder %s25, 1
      %p211 = scmp.ne.s32.totalorder %s206, %s208
      %p212 = scmp.eq.s32.totalorder %s25, 0
      %p213 = por %p211, %p212
      %p214 = scmp.ne.s32.totalorder %s206, %s208
      %p215 = scmp.eq.s32.totalorder %s30, 1
      %p216 = por %p214, %p215
      %p217 = scmp.ne.s32.totalorder %s208, %s209
      %p218 = scmp.eq.s32.totalorder %s30, 0
      %p219 = por %p217, %p218
      %p220 = scmp.ne.s32.totalorder %s208, %s209
      %p221 = scmp.eq.s32.totalorder %s31, 1
      %p222 = por %p220, %p221
      %p224 = scmp.ne.s32.totalorder %s209, %s223
      %p225 = scmp.eq.s32.totalorder %s31, 0
      %p226 = por %p224, %p225
      %s228 = sadd.s32 %s227, 1
      %p231 = scmp.eq.s32.totalorder %s25, 1
      %p232 = scmp.ne.s32.totalorder %s227, %s229
      %p233 = scmp.eq.s32.totalorder %s25, 0
      %p234 = por %p232, %p233
      %p235 = scmp.ne.s32.totalorder %s227, %s229
      %p236 = scmp.eq.s32.totalorder %s30, 1
      %p237 = por %p235, %p236
      %p238 = scmp.ne.s32.totalorder %s229, %s230
      %p239 = scmp.eq.s32.totalorder %s30, 0
      %p240 = por %p238, %p239
      %p241 = scmp.ne.s32.totalorder %s229, %s230
      %p242 = scmp.eq.s32.totalorder %s31, 1
      %p243 = por %p241, %p242
      %p245 = scmp.ne.s32.totalorder %s230, %s244
      %p246 = scmp.eq.s32.totalorder %s31, 0
      %p247 = por %p245, %p246
      %s249 = sadd.s32 %s248, 1
      %p252 = scmp.eq.s32.totalorder %s25, 1
      %p253 = scmp.ne.s32.totalorder %s248, %s250
      %p254 = scmp.eq.s32.totalorder %s25, 0
      %p255 = por %p253, %p254
      %p256 = scmp.ne.s32.totalorder %s248, %s250
      %p257 = scmp.eq.s32.totalorder %s30, 1
      %p258 = por %p256, %p257
      %p259 = scmp.ne.s32.totalorder %s250, %s251
      %p260 = scmp.eq.s32.totalorder %s30, 0
      %p261 = por %p259, %p260
      %p262 = scmp.ne.s32.totalorder %s250, %s251
      %p263 = scmp.eq.s32.totalorder %s31, 1
      %p264 = por %p262, %p263
      %p266 = scmp.ne.s32.totalorder %s251, %s265
      %p267 = scmp.eq.s32.totalorder %s31, 0
      %p268 = por %p266, %p267
      %s270 = sadd.s32 %s269, 1
      %p273 = scmp.eq.s32.totalorder %s25, 1
      %p274 = scmp.ne.s32.totalorder %s269, %s271
      %p275 = scmp.eq.s32.totalorder %s25, 0
      %p276 = por %p274, %p275
      %p277 = scmp.ne.s32.totalorder %s269, %s271
      %p278 = scmp.eq.s32.totalorder %s30, 1
      %p279 = por %p277, %p278
      %p280 = scmp.ne.s32.totalorder %s271, %s272
      %p281 = scmp.eq.s32.totalorder %s30, 0
      %p282 = por %p280, %p281
      %p283 = scmp.ne.s32.totalorder %s271, %s272
      %p284 = scmp.eq.s32.totalorder %s31, 1
      %p285 = por %p283, %p284
      %p287 = scmp.ne.s32.totalorder %s272, %s286
      %p288 = scmp.eq.s32.totalorder %s31, 0
      %p289 = por %p287, %p288
      %s291 = sadd.s32 %s290, 1
      %p294 = scmp.eq.s32.totalorder %s25, 1
      %p295 = scmp.ne.s32.totalorder %s290, %s292
      %p296 = scmp.eq.s32.totalorder %s25, 0
      %p297 = por %p295, %p296
      %p298 = scmp.ne.s32.totalorder %s290, %s292
      %p299 = scmp.eq.s32.totalorder %s30, 1
      %p300 = por %p298, %p299
      %p301 = scmp.ne.s32.totalorder %s292, %s293
      %p302 = scmp.eq.s32.totalorder %s30, 0
      %p303 = por %p301, %p302
      %p304 = scmp.ne.s32.totalorder %s292, %s293
      %p305 = scmp.eq.s32.totalorder %s31, 1
      %p306 = por %p304, %p305
      %p308 = scmp.ne.s32.totalorder %s293, %s307
      %p309 = scmp.eq.s32.totalorder %s31, 0
      %p310 = por %p308, %p309
      %s312 = sadd.s32 %s311, 1
      %p315 = scmp.eq.s32.totalorder %s25, 1
      %p316 = scmp.ne.s32.totalorder %s311, %s313
      %p317 = scmp.eq.s32.totalorder %s25, 0
      %p318 = por %p316, %p317
      %p319 = scmp.ne.s32.totalorder %s311, %s313
      %p320 = scmp.eq.s32.totalorder %s30, 1
      %p321 = por %p319, %p320
      %p322 = scmp.ne.s32.totalorder %s313, %s314
      %p323 = scmp.eq.s32.totalorder %s30, 0
      %p324 = por %p322, %p323
      %p325 = scmp.ne.s32.totalorder %s313, %s314
      %p326 = scmp.eq.s32.totalorder %s31, 1
      %p327 = por %p325, %p326
      %p329 = scmp.ne.s32.totalorder %s314, %s328
      %p330 = scmp.eq.s32.totalorder %s31, 0
      %p331 = por %p329, %p330
      %s333 = sadd.s32 %s332, 1
      %p336 = scmp.eq.s32.totalorder %s25, 1
      %p337 = scmp.ne.s32.totalorder %s332, %s334
      %p338 = scmp.eq.s32.totalorder %s25, 0
      %p339 = por %p337, %p338
      %p340 = scmp.ne.s32.totalorder %s332, %s334
      %p341 = scmp.eq.s32.totalorder %s30, 1
      %p342 = por %p340, %p341
      %p343 = scmp.ne.s32.totalorder %s334, %s335
      %p344 = scmp.eq.s32.totalorder %s30, 0
      %p345 = por %p343, %p344
      %p346 = scmp.ne.s32.totalorder %s334, %s335
      %p347 = scmp.eq.s32.totalorder %s31, 1
      %p348 = por %p346, %p347
      %p350 = scmp.ne.s32.totalorder %s335, %s349
      %p351 = scmp.eq.s32.totalorder %s31, 0
      %p352 = por %p350, %p351
      %s354 = sadd.s32 %s353, 1
      %p357 = scmp.eq.s32.totalorder %s25, 1
      %p358 = scmp.ne.s32.totalorder %s353, %s355
      %p359 = scmp.eq.s32.totalorder %s25, 0
      %p360 = por %p358, %p359
      %p361 = scmp.ne.s32.totalorder %s353, %s355
      %p362 = scmp.eq.s32.totalorder %s30, 1
      %p363 = por %p361, %p362
      %p364 = scmp.ne.s32.totalorder %s355, %s356
      %p365 = scmp.eq.s32.totalorder %s30, 0
      %p366 = por %p364, %p365
      %p367 = scmp.ne.s32.totalorder %s355, %s356
      %p368 = scmp.eq.s32.totalorder %s31, 1
      %p369 = por %p367, %p368
      %p371 = scmp.ne.s32.totalorder %s356, %s370
      %p372 = scmp.eq.s32.totalorder %s31, 0
      %p373 = por %p371, %p372
      %s374 = ssub.s32 %s25, %s32
      %p375 = scmp.eq.s32.totalorder %s374, 0
      %s377 = sadd.s32 %s376, 1
      %s378 = scalar_select %p375, %s376, %s377
      %p381 = pneg %p375
      %p382 = scmp.eq.s32.totalorder %s25, 1
      %p383 = por %p381, %p382
      %p384 = scmp.ne.s32.totalorder %s376, %s379
      %p385 = scmp.eq.s32.totalorder %s25, 0
      %p386 = por %p384, %p385
      %p387 = scmp.ne.s32.totalorder %s376, %s379
      %p388 = scmp.eq.s32.totalorder %s30, 1
      %p389 = por %p387, %p388
      %p390 = scmp.ne.s32.totalorder %s379, %s380
      %p391 = scmp.eq.s32.totalorder %s30, 0
      %p392 = por %p390, %p391
      %p393 = scmp.ne.s32.totalorder %s379, %s380
      %p394 = scmp.eq.s32.totalorder %s31, 1
      %p395 = por %p393, %p394
      %p397 = scmp.ne.s32.totalorder %s380, %s396
      %p398 = scmp.eq.s32.totalorder %s31, 0
      %p399 = por %p397, %p398
      %p400 = scmp.le.s32.totalorder 1, %s25
      %p401 = scmp.lt.s32.totalorder %s25, 3
      %p402 = pnand %p400, %p401
      %p403 = pneg %p402
      // Predicated region
      $region9: #{tpu_custom_call.1} parent=5 // pred_check
        _
      $region10: #{tpu_custom_call.1} parent=5 // pred_check_branch
        %405 = sbr.rel (%p402) target = $region12
      $region11: #{tpu_custom_call.1} parent=5 // pred_region
        %s406 = ssub.s32 %s25, 1
        // Predicated region
        $region13: #{tpu_custom_call.1} parent=11 // pred_check
          %p407 = pneg %p72
        $region14: #{tpu_custom_call.1} parent=11 // pred_check_branch
          %409 = sbr.rel (%p407) target = $region16
        $region15: #{tpu_custom_call.1} parent=11 // pred_region
          _
        $region16: #{tpu_custom_call.1} parent=11 // pred_fallthru
          _
        // Predicated region
        $region17: #{tpu_custom_call.1} parent=11 // pred_check
          %p410 = pneg %p93
        $region18: #{tpu_custom_call.1} parent=11 // pred_check_branch
          %412 = sbr.rel (%p410) target = $region20
        $region19: #{tpu_custom_call.1} parent=11 // pred_region
          _
        $region20: #{tpu_custom_call.1} parent=11 // pred_fallthru
          _
        // Predicated region
        $region21: #{tpu_custom_call.1} parent=11 // pred_check
          %p413 = pneg %p114
        $region22: #{tpu_custom_call.1} parent=11 // pred_check_branch
          %415 = sbr.rel (%p413) target = $region24
        $region23: #{tpu_custom_call.1} parent=11 // pred_region
          _
        $region24: #{tpu_custom_call.1} parent=11 // pred_fallthru
          _
        // Predicated region
        $region25: #{tpu_custom_call.1} parent=11 // pred_check
          %p416 = pneg %p135
        $region26: #{tpu_custom_call.1} parent=11 // pred_check_branch
          %418 = sbr.rel (%p416) target = $region28
        $region27: #{tpu_custom_call.1} parent=11 // pred_region
          _
        $region28: #{tpu_custom_call.1} parent=11 // pred_fallthru
          _
        // Predicated region
        $region29: #{tpu_custom_call.1} parent=11 // pred_check
          %p419 = pneg %p156
        $region30: #{tpu_custom_call.1} parent=11 // pred_check_branch
          %421 = sbr.rel (%p419) target = $region32
        $region31: #{tpu_custom_call.1} parent=11 // pred_region
          _
        $region32: #{tpu_custom_call.1} parent=11 // pred_fallthru
          _
        // Predicated region
        $region33: #{tpu_custom_call.1} parent=11 // pred_check
          %p422 = pneg %p177
        $region34: #{tpu_custom_call.1} parent=11 // pred_check_branch
          %424 = sbr.rel (%p422) target = $region36
        $region35: #{tpu_custom_call.1} parent=11 // pred_region
          _
        $region36: #{tpu_custom_call.1} parent=11 // pred_fallthru
          _
        // Predicated region
        $region37: #{tpu_custom_call.1} parent=11 // pred_check
          %p425 = pneg %p198
        $region38: #{tpu_custom_call.1} parent=11 // pred_check_branch
          %427 = sbr.rel (%p425) target = $region40
        $region39: #{tpu_custom_call.1} parent=11 // pred_region
          _
        $region40: #{tpu_custom_call.1} parent=11 // pred_fallthru
          _
        // Predicated region
        $region41: #{tpu_custom_call.1} parent=11 // pred_check
          %p428 = pneg %p219
        $region42: #{tpu_custom_call.1} parent=11 // pred_check_branch
          %430 = sbr.rel (%p428) target = $region44
        $region43: #{tpu_custom_call.1} parent=11 // pred_region
          _
        $region44: #{tpu_custom_call.1} parent=11 // pred_fallthru
          _
        // Predicated region
        $region45: #{tpu_custom_call.1} parent=11 // pred_check
          %p431 = pneg %p240
        $region46: #{tpu_custom_call.1} parent=11 // pred_check_branch
          %433 = sbr.rel (%p431) target = $region48
        $region47: #{tpu_custom_call.1} parent=11 // pred_region
          _
        $region48: #{tpu_custom_call.1} parent=11 // pred_fallthru
          _
        // Predicated region
        $region49: #{tpu_custom_call.1} parent=11 // pred_check
          %p434 = pneg %p261
        $region50: #{tpu_custom_call.1} parent=11 // pred_check_branch
          %436 = sbr.rel (%p434) target = $region52
        $region51: #{tpu_custom_call.1} parent=11 // pred_region
          _
        $region52: #{tpu_custom_call.1} parent=11 // pred_fallthru
          _
        // Predicated region
        $region53: #{tpu_custom_call.1} parent=11 // pred_check
          %p437 = pneg %p282
        $region54: #{tpu_custom_call.1} parent=11 // pred_check_branch
          %439 = sbr.rel (%p437) target = $region56
        $region55: #{tpu_custom_call.1} parent=11 // pred_region
          _
        $region56: #{tpu_custom_call.1} parent=11 // pred_fallthru
          _
        // Predicated region
        $region57: #{tpu_custom_call.1} parent=11 // pred_check
          %p440 = pneg %p303
        $region58: #{tpu_custom_call.1} parent=11 // pred_check_branch
          %442 = sbr.rel (%p440) target = $region60
        $region59: #{tpu_custom_call.1} parent=11 // pred_region
          _
        $region60: #{tpu_custom_call.1} parent=11 // pred_fallthru
          _
        // Predicated region
        $region61: #{tpu_custom_call.1} parent=11 // pred_check
          %p443 = pneg %p324
        $region62: #{tpu_custom_call.1} parent=11 // pred_check_branch
          %445 = sbr.rel (%p443) target = $region64
        $region63: #{tpu_custom_call.1} parent=11 // pred_region
          _
        $region64: #{tpu_custom_call.1} parent=11 // pred_fallthru
          _
        // Predicated region
        $region65: #{tpu_custom_call.1} parent=11 // pred_check
          %p446 = pneg %p345
        $region66: #{tpu_custom_call.1} parent=11 // pred_check_branch
          %448 = sbr.rel (%p446) target = $region68
        $region67: #{tpu_custom_call.1} parent=11 // pred_region
          _
        $region68: #{tpu_custom_call.1} parent=11 // pred_fallthru
          _
        // Predicated region
        $region69: #{tpu_custom_call.1} parent=11 // pred_check
          %p449 = pneg %p366
        $region70: #{tpu_custom_call.1} parent=11 // pred_check_branch
          %451 = sbr.rel (%p449) target = $region72
        $region71: #{tpu_custom_call.1} parent=11 // pred_region
          _
        $region72: #{tpu_custom_call.1} parent=11 // pred_fallthru
          _
      $region12: #{tpu_custom_call.1} parent=5 // pred_fallthru
        _
      %p452 = scmp.lt.s32.totalorder %s25, 2
      // Predicated region
      $region73: #{tpu_custom_call.1} parent=5 // pred_check
        %p453 = pneg %p452
      $region74: #{tpu_custom_call.1} parent=5 // pred_check_branch
        %455 = sbr.rel (%p453) target = $region76
      $region75: #{tpu_custom_call.1} parent=5 // pred_region
        // Predicated region
        $region77: #{tpu_custom_call.1} parent=75 // pred_check
          %p456 = pneg %p45
        $region78: #{tpu_custom_call.1} parent=75 // pred_check_branch
          %458 = sbr.rel (%p456) target = $region80
        $region79: #{tpu_custom_call.1} parent=75 // pred_region
          %p459 = scmp.lt.s32.totalorder %s25, 1
          %s460 = scalar_select %p459, %s25, 1
          %s461 = smul.addr %s460, 8
          %s462 = scalar_lea.vmem %s0, %s461
        $region80: #{tpu_custom_call.1} parent=75 // pred_fallthru
          _
      $region76: #{tpu_custom_call.1} parent=5 // pred_fallthru
        _
      %p463 = scmp.le.s32.totalorder 1, %s25
      %p464 = scmp.lt.s32.totalorder %s25, 3
      %p465 = pnand %p463, %p464
      %p466 = pneg %p465
      // Predicated region
      $region81: #{tpu_custom_call.1} parent=5 // pred_check
        _
      $region82: #{tpu_custom_call.1} parent=5 // pred_check_branch
        %468 = sbr.rel (%p465) target = $region84
      $region83: #{tpu_custom_call.1} parent=5 // pred_region
        %s469 = ssub.s32 %s25, 1
        %p470 = scmp.lt.s32.totalorder %s30, 1
        %s471 = scalar_select %p470, %s30, 1
        %s472 = smul.addr %s471, 8
        %s473 = scalar_lea.vmem %s0, %s472
        %p474 = pneg %p51
        %p475 = pneg %p48
        %p476 = pneg %p72
        %p477 = pneg %p69
        %p478 = pneg %p93
        %p479 = pneg %p90
        %p480 = pneg %p114
        %p481 = pneg %p111
        %p482 = pneg %p135
        %p483 = pneg %p132
        %p484 = pneg %p156
        %p485 = pneg %p153
        %p486 = pneg %p177
        %p487 = pneg %p174
        %p488 = pneg %p198
        %p489 = pneg %p195
        %p490 = pneg %p219
        %p491 = pneg %p216
        %p492 = pneg %p240
        %p493 = pneg %p237
        %p494 = pneg %p261
        %p495 = pneg %p258
        %p496 = pneg %p282
        %p497 = pneg %p279
        %p498 = pneg %p303
        %p499 = pneg %p300
        %p500 = pneg %p324
        %p501 = pneg %p321
        %p502 = pneg %p345
        %p503 = pneg %p342
        %p504 = pneg %p366
        %p505 = pneg %p363
        %p506 = pneg %p392
        %p507 = pneg %p389
        %s508 = sand.u32 %s379, 1
        %s509 = scalar_lea.sflag [#allocation4], %s508
        %s510 = sand.u32 %s379, 1
        %s511 = smul.addr %s510, 8
        %s512 = scalar_lea.vmem [#allocation3], %s511
        %p513 = scmp.lt.s32.totalorder %s30, 1
        %s514 = scalar_select %p513, %s30, 1
        %s515 = smul.addr %s514, 8
        %s516 = scalar_lea.vmem %s0, %s515
        %v518 = vld [vmem:[%s516] sm:$0xff]
        %v519 = vld [vmem:[%s1] sm:$0xff]
        %v520 = vadd.f32 %v518, %v519
        %v521 = vlaneseq
        %v522 = vshrl.u32 %v521, 7
        %v523 = vlaneseq
        %v524 = vand.u32 %v523, 127
        %vm525 = vcmp.gt.s32.totalorder %v524, %v522
        %v526 = vsel %vm525, -1e+30, 0.0
        %v527 = vld [vmem:[%s2] sm:$0x1]
        %v528 = vld [vmem:[%s3] sm:$0x1]
        %vm529 = vcmask 261120
        %v530 = vsel %vm529, %v520, 0.0
        %531 = vadd.xlane.f32.xlu0 %v530
        %v532 = vpop.xlane.xlu0 %531
        %v533 = vrcp.pop 32.0
        %v534 = vmul.f32 32.0, %v533
        %v535 = vsub.f32 1.0, %v534
        %v536 = vmul.f32 %v533, %v535
        %v537 = vadd.f32 %v533, %v536
        %vm538 = vweird.f32 %v533
        %v539 = vsel %vm538, %v533, %v537
        %v540 = vmul.f32 %v532, %v539
        %v541 = vsub.f32 %v520, %v540
        %v542 = vmul.f32 %v541, %v541
        %v543 = vsel %vm529, %v542, 0.0
        %544 = vadd.xlane.f32.xlu0 %v543
        %v545 = vpop.xlane.xlu0 %544
        %v546 = vmul.f32 %v545, %v539
        %v547 = vadd.f32 %v546, 1e-05
        %v548 = vrsqrt.pop %v547
        %v549 = vmul.f32 %v548, %v547
        %v550 = vmul.f32 %v549, %v548
        %v551 = vmul.f32 0.5, %v550
        %v552 = vsub.f32 1.5, %v551
        %v553 = vmul.f32 %v548, %v552
        %vm554 = vweird.f32 %v547
        %vm555 = vweird.f32 %v548
        %vm556 = vmor %vm554, %vm555
        %v557 = vsel %vm556, %v548, %v553
        %v558 = vmul.f32 %v541, %v557
        %v560 = vperm.slane %v527, 0
        %v562 = vmul.f32 %v558, %v560
        %v564 = vperm.slane %v528, 0
        %v566 = vadd.f32 %v562, %v564
        %v567 = vpack.c.bf16 %v566, %v566
        %v568 = vld [vmem:[%s4] sm:$0xf]
        %v569 = vld [vmem:[%s4 + $0x4] sm:$0xf]
        %v570 = vld [vmem:[%s4 + $0x8] sm:$0xf]
        %v571 = vld [vmem:[%s4 + $0xc] sm:$0xf]
        %v572 = vld [vmem:[%s5] sm:$0x1]
        %v574 = vperm.slane %v572, 0
        %v580 = vunpack.c.l.b16 %v568
        %v581 = vunpack.c.l.b16 %v569
        %v582 = vunpack.c.l.b16 %v570
        %v583 = vunpack.c.l.b16 %v571
        %v584 = vpack.c.b16 %v581, %v580
        %v585 = vpack.c.b16 %v583, %v582
        %v589 = vsel %vm529, %v567, 0
        %591 = vmatpush.bf16.msra.mxu0 0
        %592 = vmatpush.bf16.msra.mxu0 0
        %593 = vmatpush.bf16.msra.mxu0 0
        %594 = vmatpush.bf16.msra.mxu0 0
        %595 = vmatpush.bf16.msra.mxu0 0
        %596 = vmatpush.bf16.msra.mxu0 0
        %597 = vmatpush.bf16.msra.mxu0 %v585
        %598 = vmatpush.bf16.msra.mxu0 %v584
        %599 = vmatmul.bf16.gmra.mxu0 %v589
        %v600 = vpop.f32.mrf.mxu0
        %v601 = vadd.f32 %v574, %v600
        %v602 = vpop.f32.mrf.mxu0
        %603 = vdwg.mxu0
        %v604 = vpack.c.bf16 %v601, %v601
        %606 = vrot.lane.b32.xlu0 %v604, 96
        %v607 = vpop.permute.xlu0 %606
        %vm608 = vcmask 64512
        %v610 = vsel %vm608, %v604, 0
        %v613 = vsel %vm608, %v607, 0
        %615 = vmatpush.bf16.xpose.msra.mxu0 0
        %616 = vmatpush.bf16.xpose.msra.mxu0 0
        %617 = vmatpush.bf16.xpose.msra.mxu0 0
        %618 = vmatpush.bf16.xpose.msra.mxu0 0
        %619 = vmatpush.bf16.xpose.msra.mxu0 0
        %620 = vmatpush.bf16.xpose.msra.mxu0 0
        %621 = vmatpush.bf16.xpose.msra.mxu0 0
        %622 = vmatpush.bf16.xpose.msra.mxu0 %v613
        %623 = vmatmul.bf16.gmra.mxu0 %v610
        %v624 = vpop.f32.mrf.mxu0
        %v625 = vadd.f32 %v526, %v624
        %v626 = vpop.f32.mrf.mxu0
        %627 = vdwg.mxu0
        %v628 = vsel %vm608, %v625, -inf
        %629 = vmax.xlane.f32.xlu0 %v628
        %v630 = vpop.xlane.xlu0 %629
        %v631 = vsub.f32 %v625, %v630
        %v632 = vmul.f32 %v631, 1.442695
        %v633 = vpow.pop %v632
        %v634 = vsel %vm608, %v633, 0.0
        %635 = vadd.xlane.f32.xlu0 %v634
        %v636 = vpop.xlane.xlu0 %635
        %v637 = vrcp.pop %v636
        %v638 = vmul.f32 %v633, %v637
        %v639 = vpack.c.bf16 %v638, %v638
        %640 = vrot.lane.b32.xlu0 %v604, 64
        %v641 = vpop.permute.xlu0 %640
        %v643 = vsel %vm608, %v639, 0
        %vm645 = vcmask 1043456
        %v647 = vsel %vm645, %v641, 0
        %649 = vmatpush.bf16.msra.mxu0 0
        %650 = vmatpush.bf16.msra.mxu0 0
        %651 = vmatpush.bf16.msra.mxu0 0
        %652 = vmatpush.bf16.msra.mxu0 0
        %653 = vmatpush.bf16.msra.mxu0 0
        %654 = vmatpush.bf16.msra.mxu0 0
        %655 = vmatpush.bf16.msra.mxu0 0
        %656 = vmatpush.bf16.msra.mxu0 %v647
        %657 = vmatmul.bf16.gmra.mxu0 %v643
        %v658 = vpop.f32.mrf.mxu0
        %v659 = vadd.f32 0.0, %v658
        %v660 = vpop.f32.mrf.mxu0
        %661 = vdwg.mxu0
        %v662 = vpack.c.bf16 %v659, %v659
        %vm663 = vcmask 60416
        %664 = vst.msk [vmem:[#allocation2] sm:$0xf] %vm663, %v662
        %665 = vrot.lane.b32.xlu0 %v604, 120
        %v666 = vpop.permute.xlu0 %665
        %667 = vrot.lane.b32.xlu0 %v604, 88
        %v668 = vpop.permute.xlu0 %667
        %v670 = vsel %vm608, %v666, 0
        %v673 = vsel %vm608, %v668, 0
        %675 = vmatpush.bf16.xpose.msra.mxu0 0
        %676 = vmatpush.bf16.xpose.msra.mxu0 0
        %677 = vmatpush.bf16.xpose.msra.mxu0 0
        %678 = vmatpush.bf16.xpose.msra.mxu0 0
        %679 = vmatpush.bf16.xpose.msra.mxu0 0
        %680 = vmatpush.bf16.xpose.msra.mxu0 0
        %681 = vmatpush.bf16.xpose.msra.mxu0 0
        %682 = vmatpush.bf16.xpose.msra.mxu0 %v673
        %683 = vmatmul.bf16.gmra.mxu0 %v670
        %v684 = vpop.f32.mrf.mxu0
        %v685 = vadd.f32 %v526, %v684
        %v686 = vpop.f32.mrf.mxu0
        %687 = vdwg.mxu0
        %v688 = vsel %vm608, %v685, -inf
        %689 = vmax.xlane.f32.xlu0 %v688
        %v690 = vpop.xlane.xlu0 %689
        %v691 = vsub.f32 %v685, %v690
        %v692 = vmul.f32 %v691, 1.442695
        %v693 = vpow.pop %v692
        %v694 = vsel %vm608, %v693, 0.0
        %695 = vadd.xlane.f32.xlu0 %v694
        %v696 = vpop.xlane.xlu0 %695
        %v697 = vrcp.pop %v696
        %v698 = vmul.f32 %v693, %v697
        %v699 = vpack.c.bf16 %v698, %v698
        %700 = vrot.lane.b32.xlu0 %v604, 56
        %v701 = vpop.permute.xlu0 %700
        %v703 = vsel %vm608, %v699, 0
        %v706 = vsel %vm645, %v701, 0
        %708 = vmatpush.bf16.msra.mxu0 0
        %709 = vmatpush.bf16.msra.mxu0 0
        %710 = vmatpush.bf16.msra.mxu0 0
        %711 = vmatpush.bf16.msra.mxu0 0
        %712 = vmatpush.bf16.msra.mxu0 0
        %713 = vmatpush.bf16.msra.mxu0 0
        %714 = vmatpush.bf16.msra.mxu0 0
        %715 = vmatpush.bf16.msra.mxu0 %v706
        %716 = vmatmul.bf16.gmra.mxu0 %v703
        %v717 = vpop.f32.mrf.mxu0
        %v718 = vadd.f32 0.0, %v717
        %v719 = vpop.f32.mrf.mxu0
        %720 = vdwg.mxu0
        %v721 = vpack.c.bf16 %v718, %v718
        %723 = vrot.lane.b32.xlu0 %v721, 8
        %v724 = vpop.permute.xlu0 %723
        %vm726 = vcmask 126016
        %727 = vst.msk [vmem:[#allocation2] sm:$0xf] %vm726, %v724
        %728 = vrot.lane.b32.xlu0 %v604, 112
        %v729 = vpop.permute.xlu0 %728
        %730 = vrot.lane.b32.xlu0 %v604, 80
        %v731 = vpop.permute.xlu0 %730
        %v733 = vsel %vm608, %v729, 0
        %v736 = vsel %vm608, %v731, 0
        %738 = vmatpush.bf16.xpose.msra.mxu0 0
        %739 = vmatpush.bf16.xpose.msra.mxu0 0
        %740 = vmatpush.bf16.xpose.msra.mxu0 0
        %741 = vmatpush.bf16.xpose.msra.mxu0 0
        %742 = vmatpush.bf16.xpose.msra.mxu0 0
        %743 = vmatpush.bf16.xpose.msra.mxu0 0
        %744 = vmatpush.bf16.xpose.msra.mxu0 0
        %745 = vmatpush.bf16.xpose.msra.mxu0 %v736
        %746 = vmatmul.bf16.gmra.mxu0 %v733
        %v747 = vpop.f32.mrf.mxu0
        %v748 = vadd.f32 %v526, %v747
        %v749 = vpop.f32.mrf.mxu0
        %750 = vdwg.mxu0
        %v751 = vsel %vm608, %v748, -inf
        %752 = vmax.xlane.f32.xlu0 %v751
        %v753 = vpop.xlane.xlu0 %752
        %v754 = vsub.f32 %v748, %v753
        %v755 = vmul.f32 %v754, 1.442695
        %v756 = vpow.pop %v755
        %v757 = vsel %vm608, %v756, 0.0
        %758 = vadd.xlane.f32.xlu0 %v757
        %v759 = vpop.xlane.xlu0 %758
        %v760 = vrcp.pop %v759
        %v761 = vmul.f32 %v756, %v760
        %v762 = vpack.c.bf16 %v761, %v761
        %763 = vrot.lane.b32.xlu0 %v604, 48
        %v764 = vpop.permute.xlu0 %763
        %v766 = vsel %vm608, %v762, 0
        %v769 = vsel %vm645, %v764, 0
        %771 = vmatpush.bf16.msra.mxu0 0
        %772 = vmatpush.bf16.msra.mxu0 0
        %773 = vmatpush.bf16.msra.mxu0 0
        %774 = vmatpush.bf16.msra.mxu0 0
        %775 = vmatpush.bf16.msra.mxu0 0
        %776 = vmatpush.bf16.msra.mxu0 0
        %777 = vmatpush.bf16.msra.mxu0 0
        %778 = vmatpush.bf16.msra.mxu0 %v769
        %779 = vmatmul.bf16.gmra.mxu0 %v766
        %v780 = vpop.f32.mrf.mxu0
        %v781 = vadd.f32 0.0, %v780
        %v782 = vpop.f32.mrf.mxu0
        %783 = vdwg.mxu0
        %v784 = vpack.c.bf16 %v781, %v781
        %786 = vrot.lane.b32.xlu0 %v784, 16
        %v787 = vpop.permute.xlu0 %786
        %vm789 = vcmask 191616
        %790 = vst.msk [vmem:[#allocation2] sm:$0xf] %vm789, %v787
        %791 = vrot.lane.b32.xlu0 %v604, 104
        %v792 = vpop.permute.xlu0 %791
        %793 = vrot.lane.b32.xlu0 %v604, 72
        %v794 = vpop.permute.xlu0 %793
        %v796 = vsel %vm608, %v792, 0
        %v799 = vsel %vm608, %v794, 0
        %801 = vmatpush.bf16.xpose.msra.mxu0 0
        %802 = vmatpush.bf16.xpose.msra.mxu0 0
        %803 = vmatpush.bf16.xpose.msra.mxu0 0
        %804 = vmatpush.bf16.xpose.msra.mxu0 0
        %805 = vmatpush.bf16.xpose.msra.mxu0 0
        %806 = vmatpush.bf16.xpose.msra.mxu0 0
        %807 = vmatpush.bf16.xpose.msra.mxu0 0
        %808 = vmatpush.bf16.xpose.msra.mxu0 %v799
        %809 = vmatmul.bf16.gmra.mxu0 %v796
        %v810 = vpop.f32.mrf.mxu0
        %v811 = vadd.f32 %v526, %v810
        %v812 = vpop.f32.mrf.mxu0
        %813 = vdwg.mxu0
        %v814 = vsel %vm608, %v811, -inf
        %815 = vmax.xlane.f32.xlu0 %v814
        %v816 = vpop.xlane.xlu0 %815
        %v817 = vsub.f32 %v811, %v816
        %v818 = vmul.f32 %v817, 1.442695
        %v819 = vpow.pop %v818
        %v820 = vsel %vm608, %v819, 0.0
        %821 = vadd.xlane.f32.xlu0 %v820
        %v822 = vpop.xlane.xlu0 %821
        %v823 = vrcp.pop %v822
        %v824 = vmul.f32 %v819, %v823
        %v825 = vpack.c.bf16 %v824, %v824
        %826 = vrot.lane.b32.xlu0 %v604, 40
        %v827 = vpop.permute.xlu0 %826
        %v829 = vsel %vm608, %v825, 0
        %v832 = vsel %vm645, %v827, 0
        %834 = vmatpush.bf16.msra.mxu0 0
        %835 = vmatpush.bf16.msra.mxu0 0
        %836 = vmatpush.bf16.msra.mxu0 0
        %837 = vmatpush.bf16.msra.mxu0 0
        %838 = vmatpush.bf16.msra.mxu0 0
        %839 = vmatpush.bf16.msra.mxu0 0
        %840 = vmatpush.bf16.msra.mxu0 0
        %841 = vmatpush.bf16.msra.mxu0 %v832
        %842 = vmatmul.bf16.gmra.mxu0 %v829
        %v843 = vpop.f32.mrf.mxu0
        %v844 = vadd.f32 0.0, %v843
        %v845 = vpop.f32.mrf.mxu0
        %846 = vdwg.mxu0
        %v847 = vpack.c.bf16 %v844, %v844
        %849 = vrot.lane.b32.xlu0 %v847, 24
        %v850 = vpop.permute.xlu0 %849
        %vm852 = vcmask 257216
        %853 = vst.msk [vmem:[#allocation2] sm:$0xf] %vm852, %v850
        %v854 = vld [vmem:[#allocation2] sm:$0xf]
        %v855 = vld [vmem:[%s6] sm:$0xf]
        %v856 = vld [vmem:[%s6 + $0x4] sm:$0xf]
        %v857 = vld [vmem:[%s6 + $0x8] sm:$0xf]
        %v858 = vld [vmem:[%s6 + $0xc] sm:$0xf]
        %v859 = vld [vmem:[%s7] sm:$0x1]
        %v861 = vperm.slane %v859, 0
        %v867 = vunpack.c.l.b16 %v855
        %v868 = vunpack.c.l.b16 %v856
        %v869 = vunpack.c.l.b16 %v857
        %v870 = vunpack.c.l.b16 %v858
        %v871 = vpack.c.b16 %v868, %v867
        %v872 = vpack.c.b16 %v870, %v869
        %v876 = vsel %vm529, %v854, 0
        %878 = vmatpush.bf16.msra.mxu0 0
        %879 = vmatpush.bf16.msra.mxu0 0
        %880 = vmatpush.bf16.msra.mxu0 0
        %881 = vmatpush.bf16.msra.mxu0 0
        %882 = vmatpush.bf16.msra.mxu0 0
        %883 = vmatpush.bf16.msra.mxu0 0
        %884 = vmatpush.bf16.msra.mxu0 %v872
        %885 = vmatpush.bf16.msra.mxu0 %v871
        %886 = vmatmul.bf16.gmra.mxu0 %v876
        %v887 = vpop.f32.mrf.mxu0
        %v888 = vadd.f32 %v861, %v887
        %v889 = vpop.f32.mrf.mxu0
        %890 = vdwg.mxu0
        %v891 = vadd.f32 %v520, %v888
        %v892 = vld [vmem:[%s8] sm:$0x1]
        %v893 = vld [vmem:[%s9] sm:$0x1]
        %v894 = vsel %vm529, %v891, 0.0
        %895 = vadd.xlane.f32.xlu0 %v894
        %v896 = vpop.xlane.xlu0 %895
        %v897 = vmul.f32 %v896, %v539
        %v898 = vsub.f32 %v891, %v897
        %v899 = vmul.f32 %v898, %v898
        %v900 = vsel %vm529, %v899, 0.0
        %901 = vadd.xlane.f32.xlu0 %v900
        %v902 = vpop.xlane.xlu0 %901
        %v903 = vmul.f32 %v902, %v539
        %v904 = vadd.f32 %v903, 1e-05
        %v905 = vrsqrt.pop %v904
        %v906 = vmul.f32 %v905, %v904
        %v907 = vmul.f32 %v906, %v905
        %v908 = vmul.f32 0.5, %v907
        %v909 = vsub.f32 1.5, %v908
        %v910 = vmul.f32 %v905, %v909
        %vm911 = vweird.f32 %v904
        %vm912 = vweird.f32 %v905
        %vm913 = vmor %vm911, %vm912
        %v914 = vsel %vm913, %v905, %v910
        %v915 = vmul.f32 %v898, %v914
        %v917 = vperm.slane %v892, 0
        %v919 = vmul.f32 %v915, %v917
        %v921 = vperm.slane %v893, 0
        %v923 = vadd.f32 %v919, %v921
        %v924 = vpack.c.bf16 %v923, %v923
        %v925 = vld [vmem:[%s10] sm:$0xf]
        %v926 = vld [vmem:[%s10 + $0x4] sm:$0xf]
        %v927 = vld [vmem:[%s10 + $0x8] sm:$0xf]
        %v928 = vld [vmem:[%s10 + $0xc] sm:$0xf]
        %v929 = vld [vmem:[%s11] sm:$0x1]
        %v931 = vperm.slane %v929, 0
        %v937 = vunpack.c.l.b16 %v925
        %v938 = vunpack.c.l.b16 %v926
        %v939 = vunpack.c.l.b16 %v927
        %v940 = vunpack.c.l.b16 %v928
        %v941 = vpack.c.b16 %v938, %v937
        %v942 = vpack.c.b16 %v940, %v939
        %v946 = vsel %vm529, %v924, 0
        %948 = vmatpush.bf16.msra.mxu0 0
        %949 = vmatpush.bf16.msra.mxu0 0
        %950 = vmatpush.bf16.msra.mxu0 0
        %951 = vmatpush.bf16.msra.mxu0 0
        %952 = vmatpush.bf16.msra.mxu0 0
        %953 = vmatpush.bf16.msra.mxu0 0
        %954 = vmatpush.bf16.msra.mxu0 %v942
        %955 = vmatpush.bf16.msra.mxu0 %v941
        %956 = vmatmul.bf16.gmra.mxu0 %v946
        %v957 = vpop.f32.mrf.mxu0
        %v958 = vadd.f32 %v931, %v957
        %v959 = vpop.f32.mrf.mxu0
        %960 = vdwg.mxu0
        %v961 = vmul.f32 %v958, %v958
        %v962 = vmul.f32 %v958, %v961
        %v963 = vmul.f32 %v962, 0.044715
        %v964 = vadd.f32 %v958, %v963
        %v965 = vmul.f32 %v964, 0.7978846
        %v966 = vtanh.pop %v965
        %v967 = vadd.f32 %v966, 1.0
        %v968 = vmul.f32 %v967, 0.5
        %v969 = vmul.f32 %v958, %v968
        %v970 = vpack.c.bf16 %v969, %v969
        %v971 = vld [vmem:[%s12] sm:$0xf]
        %v972 = vld [vmem:[%s12 + $0x4] sm:$0xf]
        %v973 = vld [vmem:[%s12 + $0x8] sm:$0xf]
        %v974 = vld [vmem:[%s12 + $0xc] sm:$0xf]
        %v975 = vld [vmem:[%s12 + $0x10] sm:$0xf]
        %v976 = vld [vmem:[%s12 + $0x14] sm:$0xf]
        %v977 = vld [vmem:[%s12 + $0x18] sm:$0xf]
        %v978 = vld [vmem:[%s12 + $0x1c] sm:$0xf]
        %v979 = vld [vmem:[%s12 + $0x20] sm:$0xf]
        %v980 = vld [vmem:[%s12 + $0x24] sm:$0xf]
        %v981 = vld [vmem:[%s12 + $0x28] sm:$0xf]
        %v982 = vld [vmem:[%s12 + $0x2c] sm:$0xf]
        %v983 = vld [vmem:[%s12 + $0x30] sm:$0xf]
        %v984 = vld [vmem:[%s12 + $0x34] sm:$0xf]
        %v985 = vld [vmem:[%s12 + $0x38] sm:$0xf]
        %v986 = vld [vmem:[%s12 + $0x3c] sm:$0xf]
        %v987 = vld [vmem:[%s13] sm:$0x1]
        %v989 = vperm.slane %v987, 0
        %v1007 = vunpack.c.l.b16 %v971
        %v1008 = vunpack.c.l.b16 %v972
        %v1009 = vunpack.c.l.b16 %v973
        %v1010 = vunpack.c.l.b16 %v974
        %v1011 = vunpack.c.l.b16 %v975
        %v1012 = vunpack.c.l.b16 %v976
        %v1013 = vunpack.c.l.b16 %v977
        %v1014 = vunpack.c.l.b16 %v978
        %v1015 = vunpack.c.l.b16 %v979
        %v1016 = vunpack.c.l.b16 %v980
        %v1017 = vunpack.c.l.b16 %v981
        %v1018 = vunpack.c.l.b16 %v982
        %v1019 = vunpack.c.l.b16 %v983
        %v1020 = vunpack.c.l.b16 %v984
        %v1021 = vunpack.c.l.b16 %v985
        %v1022 = vunpack.c.l.b16 %v986
        %v1023 = vpack.c.b16 %v1008, %v1007
        %v1024 = vpack.c.b16 %v1010, %v1009
        %v1025 = vpack.c.b16 %v1012, %v1011
        %v1026 = vpack.c.b16 %v1014, %v1013
        %v1027 = vpack.c.b16 %v1016, %v1015
        %v1028 = vpack.c.b16 %v1018, %v1017
        %v1029 = vpack.c.b16 %v1020, %v1019
        %v1030 = vpack.c.b16 %v1022, %v1021
        %1039 = vmatpush.bf16.msra.mxu0 %v1030
        %1040 = vmatpush.bf16.msra.mxu0 %v1029
        %1041 = vmatpush.bf16.msra.mxu0 %v1028
        %1042 = vmatpush.bf16.msra.mxu0 %v1027
        %1043 = vmatpush.bf16.msra.mxu0 %v1026
        %1044 = vmatpush.bf16.msra.mxu0 %v1025
        %1045 = vmatpush.bf16.msra.mxu0 %v1024
        %1046 = vmatpush.bf16.msra.mxu0 %v1023
        %1047 = vmatmul.bf16.gmra.mxu0 %v970
        %v1048 = vpop.f32.mrf.mxu0
        %v1049 = vadd.f32 %v989, %v1048
        %v1050 = vpop.f32.mrf.mxu0
        %1051 = vdwg.mxu0
        %v1052 = vadd.f32 %v891, %v1049
        %1053 = vst.msk [vmem:[%s512] sm:$0xff] %vm529, %v1052
        %s1054 = sand.u32 %s379, 1
        %s1055 = scalar_lea.sflag [#allocation4], %s1054
        %s1056 = sand.u32 %s379, 1
        %s1057 = smul.addr %s1056, 8
        %s1058 = scalar_lea.vmem [#allocation3], %s1057
        // Predicated region
        $region85: #{tpu_custom_call.1} parent=83 // pred_check
          %p1059 = pneg %p389
        $region86: #{tpu_custom_call.1} parent=83 // pred_check_branch
          %1061 = sbr.rel (%p1059) target = $region88
        $region87: #{tpu_custom_call.1} parent=83 // pred_region
          %1063 = vsyncadd %s1055, 0
          %s1064 = smul.addr %s30, 8
          %s1065 = scalar_lea.hbm %s16, %s1064
          %s1067 = sshll.u32 %s1058, 4
          %s1068 = int_to_ptr.vmem [resolvable:$true] %s1067
          %s1069 = sshll.u32 %s1065, 4
          %s1070 = int_to_ptr.hbm [resolvable:$true] %s1069
          %1072 = dma.vmem_to_hbm [thread:$0]  %s1068, 128, %s1070, %s1055
        $region88: #{tpu_custom_call.1} parent=83 // pred_fallthru
          _
      $region84: #{tpu_custom_call.1} parent=5 // pred_fallthru
        _
      %p1073 = scmp.le.s32.totalorder 2, %s25
      // Predicated region
      $region89: #{tpu_custom_call.1} parent=5 // pred_check
        %p1074 = pneg %p1073
      $region90: #{tpu_custom_call.1} parent=5 // pred_check_branch
        %1076 = sbr.rel (%p1074) target = $region92
      $region91: #{tpu_custom_call.1} parent=5 // pred_region
        %s1077 = ssub.s32 %s25, 2
        // Predicated region
        $region93: #{tpu_custom_call.1} parent=91 // pred_check
          %p1078 = pneg %p395
        $region94: #{tpu_custom_call.1} parent=91 // pred_check_branch
          %1080 = sbr.rel (%p1078) target = $region96
        $region95: #{tpu_custom_call.1} parent=91 // pred_region
          %s1081 = sand.u32 %s380, 1
          %s1082 = scalar_lea.sflag [#allocation4], %s1081
          %s1083 = sand.u32 %s380, 1
          %s1084 = smul.addr %s1083, 8
          %s1085 = scalar_lea.vmem [#allocation3], %s1084
          %1087 = dma.done %s1082, 128
        $region96: #{tpu_custom_call.1} parent=91 // pred_fallthru
          _
      $region92: #{tpu_custom_call.1} parent=5 // pred_fallthru
        _
    $region6: #{tpu_custom_call.1} parent=1 // loop_footer
      %s29 = sadd.s32 1, %s25
    $region7: #{tpu_custom_call.1} parent=1 // loop_footer_branch
      %24 = sbr.rel target = $region3
    $region8: #{tpu_custom_call.1} parent=1 // loop_exit
      _
    %1088 = vsyncpa [#allocation4], 1
    %s1089 = scalar_lea.sflag [#allocation4], 1
    %1090 = vsyncpa %s1089, 1

</llo_original>
